<compile_context>
chip_gen: v7x
topology: tpu7x:2x2x1
jax: 0.10.0
libtpu: 0.0.40
codegen_flags: <defaults>
</compile_context>

<pallas_src>
import functools

import jax
import jax.numpy as jnp
from jax.experimental import pallas as pl
from jax.experimental.pallas import tpu as pltpu


_VMEM_BUDGET_BYTES = 40 * 1024 * 1024   # conservative: fits v7x (64 MiB/TC) and raised v5e limit


def _round_up(x, m):
    return ((x + m - 1) // m) * m


def _make_mlp_kernel(num_layers):
    """Kernel over one (TM, in_features) batch tile: whole MLP, weights VMEM-resident."""

    def kernel(*refs):
        x_ref = refs[0]
        o_ref = refs[-1]
        wb = refs[1:-1]                           # w0, b0, w1, b1, ...
        # In-kernel cast: X travels HBM->VMEM once as f32, bf16 only past here.
        h = x_ref[...].astype(jnp.bfloat16)
        for i in range(num_layers):
            w_ref = wb[2 * i]
            b_ref = wb[2 * i + 1]
            # bf16 x bf16 -> f32 accumulation on the MXU; bias added in f32.
            h = jnp.dot(h, w_ref[...], preferred_element_type=jnp.float32) + b_ref[...]
            if i < num_layers - 1:
                h = jnp.maximum(h, 0.0).astype(jnp.bfloat16)
        o_ref[...] = h.astype(o_ref.dtype)

    return kernel


def prepare_map_to_coeff_params(params):
    """One-time param prep (do NOT call per forward): bf16 weights, f32 row-vector
    biases, head padded to a multiple of 128 output lanes for lane-dense stores.

    Returns (layers, out_features) with layers a tuple of (w_bf16, b_f32)."""
    layers = [(w.astype(jnp.bfloat16), b.astype(jnp.float32).reshape(1, -1))
              for (w, b) in params]
    out_features = layers[-1][0].shape[1]
    out_padded = _round_up(out_features, 128)
    if out_padded != out_features:
        w_last, b_last = layers[-1]
        pad = out_padded - out_features
        layers[-1] = (jnp.pad(w_last, ((0, 0), (0, pad))),
                      jnp.pad(b_last, ((0, 0), (0, pad))))
    return tuple(layers), out_features


@functools.partial(
    jax.jit,
    static_argnames=("out_ch", "out_coeff", "block_m", "min_pallas_batch"))
def map_to_coeff_forward(features, layers, *, out_ch, out_coeff,
                         block_m=512, min_pallas_batch=64):
    """features: (B, in_ch, H, W) f32 NCHW.  layers: prepared (w_bf16, b_f32) tuple.

    Returns coeff: (B, out_ch, out_coeff) f32."""
    b = features.shape[0]
    in_features = features.shape[1] * features.shape[2] * features.shape[3]
    out_features = out_ch * out_coeff
    out_padded = layers[-1][0].shape[1]
    num_layers = len(layers)

    # torch's .view(-1, in_features) on contiguous NCHW: free reshape, stays f32.
    x = features.reshape(b, in_features)

    # Small-batch fallback: at these sizes a Pallas launch is pure fixed overhead.
    if b < min_pallas_batch:
        h = x.astype(jnp.bfloat16)
        for i, (w, bias) in enumerate(layers):
            h = jnp.dot(h, w, preferred_element_type=jnp.float32) + bias
            if i < num_layers - 1:
                h = jnp.maximum(h, 0.0).astype(jnp.bfloat16)
        return h[:, :out_features].reshape(b, out_ch, out_coeff)

    # --- batch tile selection -------------------------------------------------
    if b > block_m:
        tm = block_m
    elif b >= 64:
        # >= 2 grid steps so the "parallel" axis can shard over v7x's two TCs.
        tm = min(block_m, _round_up(pl.cdiv(b, 2), 16))
    else:
        tm = _round_up(b, 16)
    tm = max(16, (tm // 16) * 16)

    # Shrink tm until the working set (double-buffered f32 X, single-buffered
    # weights, double-buffered f32 out, activation slab) fits the VMEM budget.
    def vmem_need(t):
        need = 2 * t * in_features * 4                      # X tiles (f32, 2 bufs)
        need += 2 * t * out_padded * 4                      # output tiles (f32, 2 bufs)
        for w, bias in layers:                              # single-buffered weights
            need += w.size * w.dtype.itemsize + bias.size * 4
        need += t * max(w.shape[1] for w, _ in layers) * 4  # widest activation
        return need

    while tm > 16 and vmem_need(tm) > _VMEM_BUDGET_BYTES:
        tm = max(16, (tm // 2 // 16) * 16)

    grid = (pl.cdiv(b, tm),)
    vmem_limit = int(min(max(2 * vmem_need(tm), 32 * 1024 * 1024),
                         56 * 1024 * 1024))

    # --- specs ------------------------------------------------------------------
    in_specs = [pl.BlockSpec((tm, in_features), lambda i: (i, 0))]
    flat_wb = []
    for (w, bias) in layers:
        # Grid-invariant blocks -> one pipeline buffer is enough (stay VMEM-resident).
        in_specs.append(pl.BlockSpec(w.shape, lambda i: (0, 0),
                                     pipeline_mode=pl.Buffered(1)))
        in_specs.append(pl.BlockSpec(bias.shape, lambda i: (0, 0),
                                     pipeline_mode=pl.Buffered(1)))
        flat_wb.extend((w, bias))

    flops = 2 * b * sum(w.shape[0] * w.shape[1] for w, _ in layers)
    bytes_accessed = (b * in_features * 4
                      + sum(w.size * w.dtype.itemsize + bias.size * 4
                            for w, bias in layers)
                      + b * out_padded * 4)
    cost = pl.CostEstimate(flops=flops, transcendentals=0,
                           bytes_accessed=bytes_accessed)

    out = pl.pallas_call(
        _make_mlp_kernel(num_layers),
        out_shape=jax.ShapeDtypeStruct((b, out_padded), jnp.float32),
        grid_spec=pltpu.PrefetchScalarGridSpec(
            num_scalar_prefetch=0,
            grid=grid,
            in_specs=in_specs,
            out_specs=pl.BlockSpec((tm, out_padded), lambda i: (i, 0)),
        ),
        compiler_params=pltpu.CompilerParams(
            dimension_semantics=("parallel",),      # megacore sharding on v7x
            vmem_limit_bytes=vmem_limit,
        ),
        cost_estimate=cost,
    )(x, *flat_wb)

    coeff = out[:, :out_features]                   # drop lane padding
    return coeff.reshape(b, out_ch, out_coeff)      # .view(-1, out_ch, out_coeff)


def init_map_to_coeff_params(key, in_ch, img_size, out_coeff, out_ch,
                             deep_mlp=3, multy_coeff=0.5):
    """Deterministic init matching the module's shapes (PyTorch-style uniform)."""
    in_features = in_ch * img_size ** 2
    out_features = out_coeff * out_ch

    dims = [in_features]
    for _ in range(deep_mlp):
        dims.append(max(1, int(dims[-1] * multy_coeff)))
    dims.append(out_features)          # e.g. 1024 -> 512 -> 256 -> 128 -> 32

    params = []
    for i in range(len(dims) - 1):
        fan_in, fan_out = dims[i], dims[i + 1]
        key, kw, kb = jax.random.split(key, 3)
        bound = 1.0 / (fan_in ** 0.5)
        w = jax.random.uniform(kw, (fan_in, fan_out), jnp.float32, -bound, bound)
        bias = jax.random.uniform(kb, (1, fan_out), jnp.float32, -bound, bound)
        params.append((w, bias))
    return params


def _reference(features, layers, out_features, out_ch, out_coeff):
    """Pure-JAX reference in matching precision (bf16 weights/acts, f32 accum)."""
    b = features.shape[0]
    h = features.reshape(b, -1).astype(jnp.bfloat16)
    for i, (w, bias) in enumerate(layers):
        h = jnp.dot(h, w, preferred_element_type=jnp.float32) + bias
        if i < len(layers) - 1:
            h = jnp.maximum(h, 0.0).astype(jnp.bfloat16)
    return h[:, :out_features].reshape(b, out_ch, out_coeff)


if __name__ == "__main__":
    # Small shapes consistent with the module.
    B, IN_CH, IMG = 2, 4, 16          # in_features = 4 * 16^2 = 1024
    OUT_COEFF, OUT_CH = 8, 4          # head width = 32
    DEEP = 3

    key = jax.random.PRNGKey(0)
    k_feat, k_feat2, k_params = jax.random.split(key, 3)

    raw_params = init_map_to_coeff_params(k_params, IN_CH, IMG, OUT_COEFF, OUT_CH,
                                          deep_mlp=DEEP)
    layers, out_features = prepare_map_to_coeff_params(raw_params)   # one-time prep

    # --- module-typical tiny batch; Pallas path forced (min_pallas_batch=0) ----
    features = jax.random.normal(k_feat, (B, IN_CH, IMG, IMG), jnp.float32)
    coeff = map_to_coeff_forward(features, layers, out_ch=OUT_CH,
                                 out_coeff=OUT_COEFF, min_pallas_batch=0)
    coeff = jax.block_until_ready(coeff)
    assert coeff.shape == (B, OUT_CH, OUT_COEFF), coeff.shape
    ref = _reference(features, layers, out_features, OUT_CH, OUT_COEFF)
    assert jnp.allclose(coeff, ref, atol=2e-2, rtol=2e-2), \
        float(jnp.max(jnp.abs(coeff - ref)))

    # --- larger batch: multi-step grid with a ragged tail tile ------------------
    B2 = 40
    features2 = jax.random.normal(k_feat2, (B2, IN_CH, IMG, IMG), jnp.float32)
    coeff2 = map_to_coeff_forward(features2, layers, out_ch=OUT_CH,
                                  out_coeff=OUT_COEFF, block_m=16,
                                  min_pallas_batch=0)
    coeff2 = jax.block_until_ready(coeff2)
    assert coeff2.shape == (B2, OUT_CH, OUT_COEFF), coeff2.shape
    ref2 = _reference(features2, layers, out_features, OUT_CH, OUT_COEFF)
    assert jnp.allclose(coeff2, ref2, atol=2e-2, rtol=2e-2), \
        float(jnp.max(jnp.abs(coeff2 - ref2)))

    print("KERNEL_OK")
</pallas_src>

<mosaic_0001>
module attributes {stable_mosaic.version = 11 : i64} {
  func.func @kernel(%arg0: i32, %arg1: memref<16x1024xf32, #tpu.memory_space<vmem>>, %arg2: memref<1024x512xbf16, #tpu.memory_space<vmem>>, %arg3: memref<1x512xf32, #tpu.memory_space<vmem>>, %arg4: memref<512x256xbf16, #tpu.memory_space<vmem>>, %arg5: memref<1x256xf32, #tpu.memory_space<vmem>>, %arg6: memref<256x128xbf16, #tpu.memory_space<vmem>>, %arg7: memref<1x128xf32, #tpu.memory_space<vmem>>, %arg8: memref<128x128xbf16, #tpu.memory_space<vmem>>, %arg9: memref<1x128xf32, #tpu.memory_space<vmem>>, %arg10: memref<16x128xf32, #tpu.memory_space<vmem>>) attributes {dimension_semantics = [#tpu.dimension_semantics<parallel>], iteration_bounds = array<i64: 1>, scalar_prefetch = 0 : i64, scratch_operands = 0 : i64, tpu.core_type = #tpu.core_type<tc>, window_params = [{transform_indices = @transform_0, window_bounds = array<i64: 16, 1024>}, {pipeline_mode = #tpu.pipeline_mode<synchronous>, transform_indices = @transform_1, window_bounds = array<i64: 1024, 512>}, {pipeline_mode = #tpu.pipeline_mode<synchronous>, transform_indices = @transform_2, window_bounds = array<i64: 1, 512>}, {pipeline_mode = #tpu.pipeline_mode<synchronous>, transform_indices = @transform_3, window_bounds = array<i64: 512, 256>}, {pipeline_mode = #tpu.pipeline_mode<synchronous>, transform_indices = @transform_4, window_bounds = array<i64: 1, 256>}, {pipeline_mode = #tpu.pipeline_mode<synchronous>, transform_indices = @transform_5, window_bounds = array<i64: 256, 128>}, {pipeline_mode = #tpu.pipeline_mode<synchronous>, transform_indices = @transform_6, window_bounds = array<i64: 1, 128>}, {pipeline_mode = #tpu.pipeline_mode<synchronous>, transform_indices = @transform_7, window_bounds = array<i64: 128, 128>}, {pipeline_mode = #tpu.pipeline_mode<synchronous>, transform_indices = @transform_8, window_bounds = array<i64: 1, 128>}, {transform_indices = @transform_9, window_bounds = array<i64: 16, 128>}]} {
    %c0 = arith.constant 0 : index
    %c0_0 = arith.constant 0 : index
    %0 = vector.load %arg1[%c0, %c0_0] : memref<16x1024xf32, #tpu.memory_space<vmem>>, vector<16x1024xf32>
    %1 = arith.truncf %0 : vector<16x1024xf32> to vector<16x1024xbf16>
    %c0_1 = arith.constant 0 : index
    %c0_2 = arith.constant 0 : index
    %2 = vector.load %arg2[%c0_1, %c0_2] : memref<1024x512xbf16, #tpu.memory_space<vmem>>, vector<1024x512xbf16>
    %cst = arith.constant dense<0.000000e+00> : vector<16x512xf32>
    %3 = tpu.matmul %1, %2, %cst {dimension_numbers = #tpu.dot_dimension_numbers<[1], [0], [0], [1], [0, 0, 1, 1], [], []>} : vector<16x1024xbf16>, vector<1024x512xbf16>, vector<16x512xf32> -> vector<16x512xf32>
    %c0_3 = arith.constant 0 : index
    %c0_4 = arith.constant 0 : index
    %4 = vector.load %arg3[%c0_3, %c0_4] : memref<1x512xf32, #tpu.memory_space<vmem>>, vector<1x512xf32>
    %5 = vector.broadcast %4 : vector<1x512xf32> to vector<16x512xf32>
    %6 = arith.addf %3, %5 : vector<16x512xf32>
    %cst_5 = arith.constant 0.000000e+00 : f32
    %7 = vector.broadcast %cst_5 : f32 to vector<16x512xf32>
    %8 = arith.maximumf %6, %7 : vector<16x512xf32>
    %9 = arith.truncf %8 : vector<16x512xf32> to vector<16x512xbf16>
    %c0_6 = arith.constant 0 : index
    %c0_7 = arith.constant 0 : index
    %10 = vector.load %arg4[%c0_6, %c0_7] : memref<512x256xbf16, #tpu.memory_space<vmem>>, vector<512x256xbf16>
    %cst_8 = arith.constant dense<0.000000e+00> : vector<16x256xf32>
    %11 = tpu.matmul %9, %10, %cst_8 {dimension_numbers = #tpu.dot_dimension_numbers<[1], [0], [0], [1], [0, 0, 1, 1], [], []>} : vector<16x512xbf16>, vector<512x256xbf16>, vector<16x256xf32> -> vector<16x256xf32>
    %c0_9 = arith.constant 0 : index
    %c0_10 = arith.constant 0 : index
    %12 = vector.load %arg5[%c0_9, %c0_10] : memref<1x256xf32, #tpu.memory_space<vmem>>, vector<1x256xf32>
    %13 = vector.broadcast %12 : vector<1x256xf32> to vector<16x256xf32>
    %14 = arith.addf %11, %13 : vector<16x256xf32>
    %cst_11 = arith.constant 0.000000e+00 : f32
    %15 = vector.broadcast %cst_11 : f32 to vector<16x256xf32>
    %16 = arith.maximumf %14, %15 : vector<16x256xf32>
    %17 = arith.truncf %16 : vector<16x256xf32> to vector<16x256xbf16>
    %c0_12 = arith.constant 0 : index
    %c0_13 = arith.constant 0 : index
    %18 = vector.load %arg6[%c0_12, %c0_13] : memref<256x128xbf16, #tpu.memory_space<vmem>>, vector<256x128xbf16>
    %cst_14 = arith.constant dense<0.000000e+00> : vector<16x128xf32>
    %19 = tpu.matmul %17, %18, %cst_14 {dimension_numbers = #tpu.dot_dimension_numbers<[1], [0], [0], [1], [0, 0, 1, 1], [], []>} : vector<16x256xbf16>, vector<256x128xbf16>, vector<16x128xf32> -> vector<16x128xf32>
    %c0_15 = arith.constant 0 : index
    %c0_16 = arith.constant 0 : index
    %20 = vector.load %arg7[%c0_15, %c0_16] : memref<1x128xf32, #tpu.memory_space<vmem>>, vector<1x128xf32>
    %21 = vector.broadcast %20 : vector<1x128xf32> to vector<16x128xf32>
    %22 = arith.addf %19, %21 : vector<16x128xf32>
    %cst_17 = arith.constant 0.000000e+00 : f32
    %23 = vector.broadcast %cst_17 : f32 to vector<16x128xf32>
    %24 = arith.maximumf %22, %23 : vector<16x128xf32>
    %25 = arith.truncf %24 : vector<16x128xf32> to vector<16x128xbf16>
    %c0_18 = arith.constant 0 : index
    %c0_19 = arith.constant 0 : index
    %26 = vector.load %arg8[%c0_18, %c0_19] : memref<128x128xbf16, #tpu.memory_space<vmem>>, vector<128x128xbf16>
    %cst_20 = arith.constant dense<0.000000e+00> : vector<16x128xf32>
    %27 = tpu.matmul %25, %26, %cst_20 {dimension_numbers = #tpu.dot_dimension_numbers<[1], [0], [0], [1], [0, 0, 1, 1], [], []>} : vector<16x128xbf16>, vector<128x128xbf16>, vector<16x128xf32> -> vector<16x128xf32>
    %c0_21 = arith.constant 0 : index
    %c0_22 = arith.constant 0 : index
    %28 = vector.load %arg9[%c0_21, %c0_22] : memref<1x128xf32, #tpu.memory_space<vmem>>, vector<1x128xf32>
    %29 = vector.broadcast %28 : vector<1x128xf32> to vector<16x128xf32>
    %30 = arith.addf %27, %29 : vector<16x128xf32>
    %c0_23 = arith.constant 0 : index
    %c0_24 = arith.constant 0 : index
    %31 = vector.load %arg10[%c0_23, %c0_24] : memref<16x128xf32, #tpu.memory_space<vmem>>, vector<16x128xf32>
    tpu.vector_store %arg10[%c0_23, %c0_24], %30 {strides = array<i32>} : memref<16x128xf32, #tpu.memory_space<vmem>>, vector<16x128xf32>,
    return
  }
  func.func @transform_0(%arg0: i32) -> (i32, i32) {
    %c0_i32 = arith.constant 0 : i32
    %c0_i32_0 = arith.constant 0 : i32
    return %arg0, %c0_i32 : i32, i32
  }
  func.func @transform_1(%arg0: i32) -> (i32, i32) {
    %c0_i32 = arith.constant 0 : i32
    %c0_i32_0 = arith.constant 0 : i32
    %c0_i32_1 = arith.constant 0 : i32
    return %c0_i32, %c0_i32_0 : i32, i32
  }
  func.func @transform_2(%arg0: i32) -> (i32, i32) {
    %c0_i32 = arith.constant 0 : i32
    %c0_i32_0 = arith.constant 0 : i32
    %c0_i32_1 = arith.constant 0 : i32
    return %c0_i32, %c0_i32_0 : i32, i32
  }
  func.func @transform_3(%arg0: i32) -> (i32, i32) {
    %c0_i32 = arith.constant 0 : i32
    %c0_i32_0 = arith.constant 0 : i32
    %c0_i32_1 = arith.constant 0 : i32
    return %c0_i32, %c0_i32_0 : i32, i32
  }
  func.func @transform_4(%arg0: i32) -> (i32, i32) {
    %c0_i32 = arith.constant 0 : i32
    %c0_i32_0 = arith.constant 0 : i32
    %c0_i32_1 = arith.constant 0 : i32
    return %c0_i32, %c0_i32_0 : i32, i32
  }
  func.func @transform_5(%arg0: i32) -> (i32, i32) {
    %c0_i32 = arith.constant 0 : i32
    %c0_i32_0 = arith.constant 0 : i32
    %c0_i32_1 = arith.constant 0 : i32
    return %c0_i32, %c0_i32_0 : i32, i32
  }
  func.func @transform_6(%arg0: i32) -> (i32, i32) {
    %c0_i32 = arith.constant 0 : i32
    %c0_i32_0 = arith.constant 0 : i32
    %c0_i32_1 = arith.constant 0 : i32
    return %c0_i32, %c0_i32_0 : i32, i32
  }
  func.func @transform_7(%arg0: i32) -> (i32, i32) {
    %c0_i32 = arith.constant 0 : i32
    %c0_i32_0 = arith.constant 0 : i32
    %c0_i32_1 = arith.constant 0 : i32
    return %c0_i32, %c0_i32_0 : i32, i32
  }
  func.func @transform_8(%arg0: i32) -> (i32, i32) {
    %c0_i32 = arith.constant 0 : i32
    %c0_i32_0 = arith.constant 0 : i32
    %c0_i32_1 = arith.constant 0 : i32
    return %c0_i32, %c0_i32_0 : i32, i32
  }
  func.func @transform_9(%arg0: i32) -> (i32, i32) {
    %c0_i32 = arith.constant 0 : i32
    %c0_i32_0 = arith.constant 0 : i32
    return %arg0, %c0_i32 : i32, i32
  }
}

</mosaic_0001>

<llo_original>
// kernel: map_to_coeff_forward.1
$region0: #{map_to_coeff_forward.1}
  #allocation0 [shape = 'u32[]', space=smem, size = 0x4, offset = 0x4, fixed_abs, tag = 'smem constant byte address 0x4 - core index']
  #allocation1 [shape = 'u32[144,128]{1,0:T(1,128)}', space=vmem, size = 0x12000, scoped, tag = 'internal scratch']
  %s0 = inlined_call_operand.vmem [shape: f32[2,1024], index: 0, kind: input, shape index: {}]
  %s1 = inlined_call_operand.hbm [shape: bf16[1024,512], index: 1, kind: input, shape index: {}]
  %s2 = inlined_call_operand.vmem [shape: f32[1,512], index: 2, kind: input, shape index: {}]
  %s3 = inlined_call_operand.hbm [shape: bf16[512,256], index: 3, kind: input, shape index: {}]
  %s4 = inlined_call_operand.vmem [shape: f32[1,256], index: 4, kind: input, shape index: {}]
  %s5 = inlined_call_operand.vmem [shape: bf16[256,128], index: 5, kind: input, shape index: {}]
  %s6 = inlined_call_operand.vmem [shape: f32[1,128], index: 6, kind: input, shape index: {}]
  %s7 = inlined_call_operand.hbm [shape: bf16[128,128], index: 7, kind: input, shape index: {}]
  %s8 = inlined_call_operand.vmem [shape: f32[1,128], index: 8, kind: input, shape index: {}]
  %s9 = inlined_call_operand.vmem [shape: f32[2,128], index: 9, kind: output, shape index: {}]
  %s10 = sld [smem:[#allocation0]]
  $region88: #{map_to_coeff_forward.1} parent=0
    _
  %s12 = ssub.s32 1, %s10
  %s13 = scalar_select 0, %s12, %s10
  $region1: #{map_to_coeff_forward.1} parent=0
    #allocation2 [shape = 'u8[1048576]{0}', space=vmem, size = 0x100000, scoped, tag = 'input window, operand 1, single buffered']
    #allocation3 [shape = 's32[1]{0}', space=sflag, size = 0x4, scoped, tag = 'scoped memory for map_to_coeff_forward.1']
    #allocation4 [shape = 'u8[262144]{0}', space=vmem, size = 0x40000, scoped, tag = 'input window, operand 3, single buffered']
    #allocation5 [shape = 's32[1]{0}', space=sflag, size = 0x4, scoped, tag = 'scoped memory for map_to_coeff_forward.1']
    #allocation6 [shape = 'u8[32768]{0}', space=vmem, size = 0x8000, scoped, tag = 'input window, operand 7, single buffered']
    #allocation7 [shape = 'u8[8192]{0}', space=vmem, size = 0x2000, scoped, tag = 'output window, operand 0, single buffered']
    %14 = vsyncpa [#allocation3], 0
    %15 = vsyncpa [#allocation5], 0
    // Predicated region
    $region2: #{map_to_coeff_forward.1} parent=1 // pred_check
      _
    $region3: #{map_to_coeff_forward.1} parent=1 // pred_check_branch
      %17 = sbr.rel (0) target = $region5
    $region4: #{map_to_coeff_forward.1} parent=1 // pred_region
      _
    $region5: #{map_to_coeff_forward.1} parent=1 // pred_fallthru
      _
    // Predicated region
    $region6: #{map_to_coeff_forward.1} parent=1 // pred_check
      _
    $region7: #{map_to_coeff_forward.1} parent=1 // pred_check_branch
      %19 = sbr.rel (0) target = $region9
    $region8: #{map_to_coeff_forward.1} parent=1 // pred_region
      %s21 = ssub.s32 32768, 32768
      %22 = vsyncadd [#allocation3], %s21
      %s23 = sshll.u32 [#allocation2], 4
      %s24 = int_to_ptr.vmem [resolvable:$true] %s23
      %29 = dma.hbm_to_vmem [thread:$0]  %s1, 32768, %s24, [#allocation3], 256, 256, 16
    $region9: #{map_to_coeff_forward.1} parent=1 // pred_fallthru
      _
    // Predicated region
    $region10: #{map_to_coeff_forward.1} parent=1 // pred_check
      _
    $region11: #{map_to_coeff_forward.1} parent=1 // pred_check_branch
      %31 = sbr.rel (0) target = $region13
    $region12: #{map_to_coeff_forward.1} parent=1 // pred_region
      _
    $region13: #{map_to_coeff_forward.1} parent=1 // pred_fallthru
      _
    // Predicated region
    $region14: #{map_to_coeff_forward.1} parent=1 // pred_check
      _
    $region15: #{map_to_coeff_forward.1} parent=1 // pred_check_branch
      %33 = sbr.rel (0) target = $region17
    $region16: #{map_to_coeff_forward.1} parent=1 // pred_region
      %s35 = ssub.s32 8192, 8192
      %36 = vsyncadd [#allocation5], %s35
      %s37 = sshll.u32 [#allocation4], 4
      %s38 = int_to_ptr.vmem [resolvable:$true] %s37
      %43 = dma.hbm_to_vmem [thread:$0]  %s3, 8192, %s38, [#allocation5], 128, 128, 8
    $region17: #{map_to_coeff_forward.1} parent=1 // pred_fallthru
      _
    // Predicated region
    $region18: #{map_to_coeff_forward.1} parent=1 // pred_check
      _
    $region19: #{map_to_coeff_forward.1} parent=1 // pred_check_branch
      %45 = sbr.rel (0) target = $region21
    $region20: #{map_to_coeff_forward.1} parent=1 // pred_region
      _
    $region21: #{map_to_coeff_forward.1} parent=1 // pred_fallthru
      _
    // Predicated region
    $region22: #{map_to_coeff_forward.1} parent=1 // pred_check
      _
    $region23: #{map_to_coeff_forward.1} parent=1 // pred_check_branch
      %47 = sbr.rel (0) target = $region25
    $region24: #{map_to_coeff_forward.1} parent=1 // pred_region
      _
    $region25: #{map_to_coeff_forward.1} parent=1 // pred_fallthru
      _
    // Predicated region
    $region26: #{map_to_coeff_forward.1} parent=1 // pred_check
      _
    $region27: #{map_to_coeff_forward.1} parent=1 // pred_check_branch
      %49 = sbr.rel (0) target = $region29
    $region28: #{map_to_coeff_forward.1} parent=1 // pred_region
      _
    $region29: #{map_to_coeff_forward.1} parent=1 // pred_fallthru
      _
    // Predicated region
    $region30: #{map_to_coeff_forward.1} parent=1 // pred_check
      _
    $region31: #{map_to_coeff_forward.1} parent=1 // pred_check_branch
      %51 = sbr.rel (0) target = $region33
    $region32: #{map_to_coeff_forward.1} parent=1 // pred_region
      %s53 = ssub.s32 1024, 1024
      %54 = vsyncadd [#allocation5], %s53
      %s55 = sshll.u32 [#allocation6], 4
      %s56 = int_to_ptr.vmem [resolvable:$true] %s55
      %61 = dma.hbm_to_vmem [thread:$0]  %s7, 1024, %s56, [#allocation5], 64, 64, 4
    $region33: #{map_to_coeff_forward.1} parent=1 // pred_fallthru
      _
    // Predicated region
    $region34: #{map_to_coeff_forward.1} parent=1 // pred_check
      _
    $region35: #{map_to_coeff_forward.1} parent=1 // pred_check_branch
      %63 = sbr.rel (0) target = $region37
    $region36: #{map_to_coeff_forward.1} parent=1 // pred_region
      _
    $region37: #{map_to_coeff_forward.1} parent=1 // pred_fallthru
      _
    // Predicated region
    $region38: #{map_to_coeff_forward.1} parent=1 // pred_check
      _
    $region39: #{map_to_coeff_forward.1} parent=1 // pred_check_branch
      %65 = sbr.rel (0) target = $region41
    $region40: #{map_to_coeff_forward.1} parent=1 // pred_region
      %66 = dma.done [#allocation3], 32768
    $region41: #{map_to_coeff_forward.1} parent=1 // pred_fallthru
      _
    // Predicated region
    $region42: #{map_to_coeff_forward.1} parent=1 // pred_check
      _
    $region43: #{map_to_coeff_forward.1} parent=1 // pred_check_branch
      %68 = sbr.rel (0) target = $region45
    $region44: #{map_to_coeff_forward.1} parent=1 // pred_region
      %69 = dma.done [#allocation5], 8192
    $region45: #{map_to_coeff_forward.1} parent=1 // pred_fallthru
      _
    // Predicated region
    $region46: #{map_to_coeff_forward.1} parent=1 // pred_check
      _
    $region47: #{map_to_coeff_forward.1} parent=1 // pred_check_branch
      %71 = sbr.rel (0) target = $region49
    $region48: #{map_to_coeff_forward.1} parent=1 // pred_region
      %72 = dma.done [#allocation5], 1024
    $region49: #{map_to_coeff_forward.1} parent=1 // pred_fallthru
      _
    %v74 = vld [vmem:[%s0] sm:$0xff]
    %v75 = vld [vmem:[%s0 + $0x8] sm:$0xff]
    %v76 = vld [vmem:[%s0 + $0x10] sm:$0xff]
    %v77 = vld [vmem:[%s0 + $0x18] sm:$0xff]
    %v78 = vld [vmem:[%s0 + $0x20] sm:$0xff]
    %v79 = vld [vmem:[%s0 + $0x28] sm:$0xff]
    %v80 = vld [vmem:[%s0 + $0x30] sm:$0xff]
    %v81 = vld [vmem:[%s0 + $0x38] sm:$0xff]
    %v82 = vld [vmem:[%s0 + $0x40] sm:$0xff]
    %v83 = vld [vmem:[%s0 + $0x48] sm:$0xff]
    %v84 = vld [vmem:[%s0 + $0x50] sm:$0xff]
    %v85 = vld [vmem:[%s0 + $0x58] sm:$0xff]
    %v86 = vld [vmem:[%s0 + $0x60] sm:$0xff]
    %v87 = vld [vmem:[%s0 + $0x68] sm:$0xff]
    %v88 = vld [vmem:[%s0 + $0x70] sm:$0xff]
    %v89 = vld [vmem:[%s0 + $0x78] sm:$0xff]
    %v106 = vcombine.low %v74, %v76
    %v107 = vcombine.high %v74, %v76
    %v108 = vcombine.low %v78, %v80
    %v109 = vcombine.high %v78, %v80
    %v111 = vunpack.c.l.s4 1983009808
    %v112 = vunpack.c.0.s8 %v111
    %v113 = vlaneseq
    %v114 = vshrl.u32 %v113, 7
    %v115 = vsub.s32 %v112, %v114
    %v116 = vrot.slane %v106, %v115
    %v118 = vunpack.c.l.s4 1983009808
    %v119 = vunpack.c.0.s8 %v118
    %v120 = vlaneseq
    %v121 = vshrl.u32 %v120, 7
    %v122 = vsub.s32 %v119, %v121
    %v123 = vrot.slane %v107, %v122
    %v125 = vunpack.c.l.s4 1983009808
    %v126 = vunpack.c.0.s8 %v125
    %v127 = vlaneseq
    %v128 = vshrl.u32 %v127, 7
    %v129 = vsub.s32 %v126, %v128
    %v130 = vrot.slane %v108, %v129
    %v132 = vunpack.c.l.s4 1983009808
    %v133 = vunpack.c.0.s8 %v132
    %v134 = vlaneseq
    %v135 = vshrl.u32 %v134, 7
    %v136 = vsub.s32 %v133, %v135
    %v137 = vrot.slane %v109, %v136
    %v138 = vcombine.low %v116, %v130
    %v139 = vcombine.high %v116, %v130
    %v140 = vcombine.low %v123, %v137
    %v141 = vcombine.high %v123, %v137
    %v142 = vcombine.low %v75, %v77
    %v143 = vcombine.high %v75, %v77
    %v144 = vcombine.low %v79, %v81
    %v145 = vcombine.high %v79, %v81
    %v147 = vunpack.c.l.s4 1983009808
    %v148 = vunpack.c.0.s8 %v147
    %v149 = vlaneseq
    %v150 = vshrl.u32 %v149, 7
    %v151 = vsub.s32 %v148, %v150
    %v152 = vrot.slane %v142, %v151
    %v154 = vunpack.c.l.s4 1983009808
    %v155 = vunpack.c.0.s8 %v154
    %v156 = vlaneseq
    %v157 = vshrl.u32 %v156, 7
    %v158 = vsub.s32 %v155, %v157
    %v159 = vrot.slane %v143, %v158
    %v161 = vunpack.c.l.s4 1983009808
    %v162 = vunpack.c.0.s8 %v161
    %v163 = vlaneseq
    %v164 = vshrl.u32 %v163, 7
    %v165 = vsub.s32 %v162, %v164
    %v166 = vrot.slane %v144, %v165
    %v168 = vunpack.c.l.s4 1983009808
    %v169 = vunpack.c.0.s8 %v168
    %v170 = vlaneseq
    %v171 = vshrl.u32 %v170, 7
    %v172 = vsub.s32 %v169, %v171
    %v173 = vrot.slane %v145, %v172
    %v174 = vcombine.low %v152, %v166
    %v175 = vcombine.high %v152, %v166
    %v176 = vcombine.low %v159, %v173
    %v177 = vcombine.high %v159, %v173
    %v178 = vcombine.low %v82, %v84
    %v179 = vcombine.high %v82, %v84
    %v180 = vcombine.low %v86, %v88
    %v181 = vcombine.high %v86, %v88
    %v183 = vunpack.c.l.s4 1983009808
    %v184 = vunpack.c.0.s8 %v183
    %v185 = vlaneseq
    %v186 = vshrl.u32 %v185, 7
    %v187 = vsub.s32 %v184, %v186
    %v188 = vrot.slane %v178, %v187
    %v190 = vunpack.c.l.s4 1983009808
    %v191 = vunpack.c.0.s8 %v190
    %v192 = vlaneseq
    %v193 = vshrl.u32 %v192, 7
    %v194 = vsub.s32 %v191, %v193
    %v195 = vrot.slane %v179, %v194
    %v197 = vunpack.c.l.s4 1983009808
    %v198 = vunpack.c.0.s8 %v197
    %v199 = vlaneseq
    %v200 = vshrl.u32 %v199, 7
    %v201 = vsub.s32 %v198, %v200
    %v202 = vrot.slane %v180, %v201
    %v204 = vunpack.c.l.s4 1983009808
    %v205 = vunpack.c.0.s8 %v204
    %v206 = vlaneseq
    %v207 = vshrl.u32 %v206, 7
    %v208 = vsub.s32 %v205, %v207
    %v209 = vrot.slane %v181, %v208
    %v210 = vcombine.low %v188, %v202
    %v211 = vcombine.high %v188, %v202
    %v212 = vcombine.low %v195, %v209
    %v213 = vcombine.high %v195, %v209
    %v214 = vcombine.low %v83, %v85
    %v215 = vcombine.high %v83, %v85
    %v216 = vcombine.low %v87, %v89
    %v217 = vcombine.high %v87, %v89
    %v219 = vunpack.c.l.s4 1983009808
    %v220 = vunpack.c.0.s8 %v219
    %v221 = vlaneseq
    %v222 = vshrl.u32 %v221, 7
    %v223 = vsub.s32 %v220, %v222
    %v224 = vrot.slane %v214, %v223
    %v226 = vunpack.c.l.s4 1983009808
    %v227 = vunpack.c.0.s8 %v226
    %v228 = vlaneseq
    %v229 = vshrl.u32 %v228, 7
    %v230 = vsub.s32 %v227, %v229
    %v231 = vrot.slane %v215, %v230
    %v233 = vunpack.c.l.s4 1983009808
    %v234 = vunpack.c.0.s8 %v233
    %v235 = vlaneseq
    %v236 = vshrl.u32 %v235, 7
    %v237 = vsub.s32 %v234, %v236
    %v238 = vrot.slane %v216, %v237
    %v240 = vunpack.c.l.s4 1983009808
    %v241 = vunpack.c.0.s8 %v240
    %v242 = vlaneseq
    %v243 = vshrl.u32 %v242, 7
    %v244 = vsub.s32 %v241, %v243
    %v245 = vrot.slane %v217, %v244
    %v246 = vcombine.low %v224, %v238
    %v247 = vcombine.high %v224, %v238
    %v248 = vcombine.low %v231, %v245
    %v249 = vcombine.high %v231, %v245
    %v266 = vpack.c.bf16 %v210, %v138
    %v267 = vpack.c.bf16 %v211, %v139
    %v268 = vpack.c.bf16 %v212, %v140
    %v269 = vpack.c.bf16 %v213, %v141
    %v270 = vpack.c.bf16 %v246, %v174
    %v271 = vpack.c.bf16 %v247, %v175
    %v272 = vpack.c.bf16 %v248, %v176
    %v273 = vpack.c.bf16 %v249, %v177
    %v274 = vld [vmem:[#allocation2] sm:$0xff]
    %v275 = vld [vmem:[#allocation2 + $0x8] sm:$0xff]
    %v276 = vld [vmem:[#allocation2 + $0x10] sm:$0xff]
    %v277 = vld [vmem:[#allocation2 + $0x18] sm:$0xff]
    %v278 = vld [vmem:[#allocation2 + $0x20] sm:$0xff]
    %v279 = vld [vmem:[#allocation2 + $0x28] sm:$0xff]
    %v280 = vld [vmem:[#allocation2 + $0x30] sm:$0xff]
    %v281 = vld [vmem:[#allocation2 + $0x38] sm:$0xff]
    %v282 = vld [vmem:[#allocation2 + $0x40] sm:$0xff]
    %v283 = vld [vmem:[#allocation2 + $0x48] sm:$0xff]
    %v284 = vld [vmem:[#allocation2 + $0x50] sm:$0xff]
    %v285 = vld [vmem:[#allocation2 + $0x58] sm:$0xff]
    %v286 = vld [vmem:[#allocation2 + $0x60] sm:$0xff]
    %v287 = vld [vmem:[#allocation2 + $0x68] sm:$0xff]
    %v288 = vld [vmem:[#allocation2 + $0x70] sm:$0xff]
    %v289 = vld [vmem:[#allocation2 + $0x78] sm:$0xff]
    %v290 = vld [vmem:[#allocation2 + $0x80] sm:$0xff]
    %v291 = vld [vmem:[#allocation2 + $0x88] sm:$0xff]
    %v292 = vld [vmem:[#allocation2 + $0x90] sm:$0xff]
    %v293 = vld [vmem:[#allocation2 + $0x98] sm:$0xff]
    %v294 = vld [vmem:[#allocation2 + $0xa0] sm:$0xff]
    %v295 = vld [vmem:[#allocation2 + $0xa8] sm:$0xff]
    %v296 = vld [vmem:[#allocation2 + $0xb0] sm:$0xff]
    %v297 = vld [vmem:[#allocation2 + $0xb8] sm:$0xff]
    %v298 = vld [vmem:[#allocation2 + $0xc0] sm:$0xff]
    %v299 = vld [vmem:[#allocation2 + $0xc8] sm:$0xff]
    %v300 = vld [vmem:[#allocation2 + $0xd0] sm:$0xff]
    %v301 = vld [vmem:[#allocation2 + $0xd8] sm:$0xff]
    %v302 = vld [vmem:[#allocation2 + $0xe0] sm:$0xff]
    %v303 = vld [vmem:[#allocation2 + $0xe8] sm:$0xff]
    %v304 = vld [vmem:[#allocation2 + $0xf0] sm:$0xff]
    %v305 = vld [vmem:[#allocation2 + $0xf8] sm:$0xff]
    %v306 = vld [vmem:[#allocation2 + $0x100] sm:$0xff]
    %v307 = vld [vmem:[#allocation2 + $0x108] sm:$0xff]
    %v308 = vld [vmem:[#allocation2 + $0x110] sm:$0xff]
    %v309 = vld [vmem:[#allocation2 + $0x118] sm:$0xff]
    %v310 = vld [vmem:[#allocation2 + $0x120] sm:$0xff]
    %v311 = vld [vmem:[#allocation2 + $0x128] sm:$0xff]
    %v312 = vld [vmem:[#allocation2 + $0x130] sm:$0xff]
    %v313 = vld [vmem:[#allocation2 + $0x138] sm:$0xff]
    %v314 = vld [vmem:[#allocation2 + $0x140] sm:$0xff]
    %v315 = vld [vmem:[#allocation2 + $0x148] sm:$0xff]
    %v316 = vld [vmem:[#allocation2 + $0x150] sm:$0xff]
    %v317 = vld [vmem:[#allocation2 + $0x158] sm:$0xff]
    %v318 = vld [vmem:[#allocation2 + $0x160] sm:$0xff]
    %v319 = vld [vmem:[#allocation2 + $0x168] sm:$0xff]
    %v320 = vld [vmem:[#allocation2 + $0x170] sm:$0xff]
    %v321 = vld [vmem:[#allocation2 + $0x178] sm:$0xff]
    %v322 = vld [vmem:[#allocation2 + $0x180] sm:$0xff]
    %v323 = vld [vmem:[#allocation2 + $0x188] sm:$0xff]
    %v324 = vld [vmem:[#allocation2 + $0x190] sm:$0xff]
    %v325 = vld [vmem:[#allocation2 + $0x198] sm:$0xff]
    %v326 = vld [vmem:[#allocation2 + $0x1a0] sm:$0xff]
    %v327 = vld [vmem:[#allocation2 + $0x1a8] sm:$0xff]
    %v328 = vld [vmem:[#allocation2 + $0x1b0] sm:$0xff]
    %v329 = vld [vmem:[#allocation2 + $0x1b8] sm:$0xff]
    %v330 = vld [vmem:[#allocation2 + $0x1c0] sm:$0xff]
    %v331 = vld [vmem:[#allocation2 + $0x1c8] sm:$0xff]
    %v332 = vld [vmem:[#allocation2 + $0x1d0] sm:$0xff]
    %v333 = vld [vmem:[#allocation2 + $0x1d8] sm:$0xff]
    %v334 = vld [vmem:[#allocation2 + $0x1e0] sm:$0xff]
    %v335 = vld [vmem:[#allocation2 + $0x1e8] sm:$0xff]
    %v336 = vld [vmem:[#allocation2 + $0x1f0] sm:$0xff]
    %v337 = vld [vmem:[#allocation2 + $0x1f8] sm:$0xff]
    %v338 = vld [vmem:[#allocation2 + $0x200] sm:$0xff]
    %v339 = vld [vmem:[#allocation2 + $0x208] sm:$0xff]
    %v340 = vld [vmem:[#allocation2 + $0x210] sm:$0xff]
    %v341 = vld [vmem:[#allocation2 + $0x218] sm:$0xff]
    %v342 = vld [vmem:[#allocation2 + $0x220] sm:$0xff]
    %v343 = vld [vmem:[#allocation2 + $0x228] sm:$0xff]
    %v344 = vld [vmem:[#allocation2 + $0x230] sm:$0xff]
    %v345 = vld [vmem:[#allocation2 + $0x238] sm:$0xff]
    %v346 = vld [vmem:[#allocation2 + $0x240] sm:$0xff]
    %v347 = vld [vmem:[#allocation2 + $0x248] sm:$0xff]
    %v348 = vld [vmem:[#allocation2 + $0x250] sm:$0xff]
    %v349 = vld [vmem:[#allocation2 + $0x258] sm:$0xff]
    %v350 = vld [vmem:[#allocation2 + $0x260] sm:$0xff]
    %v351 = vld [vmem:[#allocation2 + $0x268] sm:$0xff]
    %v352 = vld [vmem:[#allocation2 + $0x270] sm:$0xff]
    %v353 = vld [vmem:[#allocation2 + $0x278] sm:$0xff]
    %v354 = vld [vmem:[#allocation2 + $0x280] sm:$0xff]
    %v355 = vld [vmem:[#allocation2 + $0x288] sm:$0xff]
    %v356 = vld [vmem:[#allocation2 + $0x290] sm:$0xff]
    %v357 = vld [vmem:[#allocation2 + $0x298] sm:$0xff]
    %v358 = vld [vmem:[#allocation2 + $0x2a0] sm:$0xff]
    %v359 = vld [vmem:[#allocation2 + $0x2a8] sm:$0xff]
    %v360 = vld [vmem:[#allocation2 + $0x2b0] sm:$0xff]
    %v361 = vld [vmem:[#allocation2 + $0x2b8] sm:$0xff]
    %v362 = vld [vmem:[#allocation2 + $0x2c0] sm:$0xff]
    %v363 = vld [vmem:[#allocation2 + $0x2c8] sm:$0xff]
    %v364 = vld [vmem:[#allocation2 + $0x2d0] sm:$0xff]
    %v365 = vld [vmem:[#allocation2 + $0x2d8] sm:$0xff]
    %v366 = vld [vmem:[#allocation2 + $0x2e0] sm:$0xff]
    %v367 = vld [vmem:[#allocation2 + $0x2e8] sm:$0xff]
    %v368 = vld [vmem:[#allocation2 + $0x2f0] sm:$0xff]
    %v369 = vld [vmem:[#allocation2 + $0x2f8] sm:$0xff]
    %v370 = vld [vmem:[#allocation2 + $0x300] sm:$0xff]
    %v371 = vld [vmem:[#allocation2 + $0x308] sm:$0xff]
    %v372 = vld [vmem:[#allocation2 + $0x310] sm:$0xff]
    %v373 = vld [vmem:[#allocation2 + $0x318] sm:$0xff]
    %v374 = vld [vmem:[#allocation2 + $0x320] sm:$0xff]
    %v375 = vld [vmem:[#allocation2 + $0x328] sm:$0xff]
    %v376 = vld [vmem:[#allocation2 + $0x330] sm:$0xff]
    %v377 = vld [vmem:[#allocation2 + $0x338] sm:$0xff]
    %v378 = vld [vmem:[#allocation2 + $0x340] sm:$0xff]
    %v379 = vld [vmem:[#allocation2 + $0x348] sm:$0xff]
    %v380 = vld [vmem:[#allocation2 + $0x350] sm:$0xff]
    %v381 = vld [vmem:[#allocation2 + $0x358] sm:$0xff]
    %v382 = vld [vmem:[#allocation2 + $0x360] sm:$0xff]
    %v383 = vld [vmem:[#allocation2 + $0x368] sm:$0xff]
    %v384 = vld [vmem:[#allocation2 + $0x370] sm:$0xff]
    %v385 = vld [vmem:[#allocation2 + $0x378] sm:$0xff]
    %v386 = vld [vmem:[#allocation2 + $0x380] sm:$0xff]
    %v387 = vld [vmem:[#allocation2 + $0x388] sm:$0xff]
    %v388 = vld [vmem:[#allocation2 + $0x390] sm:$0xff]
    %v389 = vld [vmem:[#allocation2 + $0x398] sm:$0xff]
    %v390 = vld [vmem:[#allocation2 + $0x3a0] sm:$0xff]
    %v391 = vld [vmem:[#allocation2 + $0x3a8] sm:$0xff]
    %v392 = vld [vmem:[#allocation2 + $0x3b0] sm:$0xff]
    %v393 = vld [vmem:[#allocation2 + $0x3b8] sm:$0xff]
    %v394 = vld [vmem:[#allocation2 + $0x3c0] sm:$0xff]
    %v395 = vld [vmem:[#allocation2 + $0x3c8] sm:$0xff]
    %v396 = vld [vmem:[#allocation2 + $0x3d0] sm:$0xff]
    %v397 = vld [vmem:[#allocation2 + $0x3d8] sm:$0xff]
    %v398 = vld [vmem:[#allocation2 + $0x3e0] sm:$0xff]
    %v399 = vld [vmem:[#allocation2 + $0x3e8] sm:$0xff]
    %v400 = vld [vmem:[#allocation2 + $0x3f0] sm:$0xff]
    %v401 = vld [vmem:[#allocation2 + $0x3f8] sm:$0xff]
    %v402 = vld [vmem:[#allocation2 + $0x400] sm:$0xff]
    %v403 = vld [vmem:[#allocation2 + $0x408] sm:$0xff]
    %v404 = vld [vmem:[#allocation2 + $0x410] sm:$0xff]
    %v405 = vld [vmem:[#allocation2 + $0x418] sm:$0xff]
    %v406 = vld [vmem:[#allocation2 + $0x420] sm:$0xff]
    %v407 = vld [vmem:[#allocation2 + $0x428] sm:$0xff]
    %v408 = vld [vmem:[#allocation2 + $0x430] sm:$0xff]
    %v409 = vld [vmem:[#allocation2 + $0x438] sm:$0xff]
    %v410 = vld [vmem:[#allocation2 + $0x440] sm:$0xff]
    %v411 = vld [vmem:[#allocation2 + $0x448] sm:$0xff]
    %v412 = vld [vmem:[#allocation2 + $0x450] sm:$0xff]
    %v413 = vld [vmem:[#allocation2 + $0x458] sm:$0xff]
    %v414 = vld [vmem:[#allocation2 + $0x460] sm:$0xff]
    %v415 = vld [vmem:[#allocation2 + $0x468] sm:$0xff]
    %v416 = vld [vmem:[#allocation2 + $0x470] sm:$0xff]
    %v417 = vld [vmem:[#allocation2 + $0x478] sm:$0xff]
    %v418 = vld [vmem:[#allocation2 + $0x480] sm:$0xff]
    %v419 = vld [vmem:[#allocation2 + $0x488] sm:$0xff]
    %v420 = vld [vmem:[#allocation2 + $0x490] sm:$0xff]
    %v421 = vld [vmem:[#allocation2 + $0x498] sm:$0xff]
    %v422 = vld [vmem:[#allocation2 + $0x4a0] sm:$0xff]
    %v423 = vld [vmem:[#allocation2 + $0x4a8] sm:$0xff]
    %v424 = vld [vmem:[#allocation2 + $0x4b0] sm:$0xff]
    %v425 = vld [vmem:[#allocation2 + $0x4b8] sm:$0xff]
    %v426 = vld [vmem:[#allocation2 + $0x4c0] sm:$0xff]
    %v427 = vld [vmem:[#allocation2 + $0x4c8] sm:$0xff]
    %v428 = vld [vmem:[#allocation2 + $0x4d0] sm:$0xff]
    %v429 = vld [vmem:[#allocation2 + $0x4d8] sm:$0xff]
    %v430 = vld [vmem:[#allocation2 + $0x4e0] sm:$0xff]
    %v431 = vld [vmem:[#allocation2 + $0x4e8] sm:$0xff]
    %v432 = vld [vmem:[#allocation2 + $0x4f0] sm:$0xff]
    %v433 = vld [vmem:[#allocation2 + $0x4f8] sm:$0xff]
    %v434 = vld [vmem:[#allocation2 + $0x500] sm:$0xff]
    %v435 = vld [vmem:[#allocation2 + $0x508] sm:$0xff]
    %v436 = vld [vmem:[#allocation2 + $0x510] sm:$0xff]
    %v437 = vld [vmem:[#allocation2 + $0x518] sm:$0xff]
    %v438 = vld [vmem:[#allocation2 + $0x520] sm:$0xff]
    %v439 = vld [vmem:[#allocation2 + $0x528] sm:$0xff]
    %v440 = vld [vmem:[#allocation2 + $0x530] sm:$0xff]
    %v441 = vld [vmem:[#allocation2 + $0x538] sm:$0xff]
    %v442 = vld [vmem:[#allocation2 + $0x540] sm:$0xff]
    %v443 = vld [vmem:[#allocation2 + $0x548] sm:$0xff]
    %v444 = vld [vmem:[#allocation2 + $0x550] sm:$0xff]
    %v445 = vld [vmem:[#allocation2 + $0x558] sm:$0xff]
    %v446 = vld [vmem:[#allocation2 + $0x560] sm:$0xff]
    %v447 = vld [vmem:[#allocation2 + $0x568] sm:$0xff]
    %v448 = vld [vmem:[#allocation2 + $0x570] sm:$0xff]
    %v449 = vld [vmem:[#allocation2 + $0x578] sm:$0xff]
    %v450 = vld [vmem:[#allocation2 + $0x580] sm:$0xff]
    %v451 = vld [vmem:[#allocation2 + $0x588] sm:$0xff]
    %v452 = vld [vmem:[#allocation2 + $0x590] sm:$0xff]
    %v453 = vld [vmem:[#allocation2 + $0x598] sm:$0xff]
    %v454 = vld [vmem:[#allocation2 + $0x5a0] sm:$0xff]
    %v455 = vld [vmem:[#allocation2 + $0x5a8] sm:$0xff]
    %v456 = vld [vmem:[#allocation2 + $0x5b0] sm:$0xff]
    %v457 = vld [vmem:[#allocation2 + $0x5b8] sm:$0xff]
    %v458 = vld [vmem:[#allocation2 + $0x5c0] sm:$0xff]
    %v459 = vld [vmem:[#allocation2 + $0x5c8] sm:$0xff]
    %v460 = vld [vmem:[#allocation2 + $0x5d0] sm:$0xff]
    %v461 = vld [vmem:[#allocation2 + $0x5d8] sm:$0xff]
    %v462 = vld [vmem:[#allocation2 + $0x5e0] sm:$0xff]
    %v463 = vld [vmem:[#allocation2 + $0x5e8] sm:$0xff]
    %v464 = vld [vmem:[#allocation2 + $0x5f0] sm:$0xff]
    %v465 = vld [vmem:[#allocation2 + $0x5f8] sm:$0xff]
    %v466 = vld [vmem:[#allocation2 + $0x600] sm:$0xff]
    %v467 = vld [vmem:[#allocation2 + $0x608] sm:$0xff]
    %v468 = vld [vmem:[#allocation2 + $0x610] sm:$0xff]
    %v469 = vld [vmem:[#allocation2 + $0x618] sm:$0xff]
    %v470 = vld [vmem:[#allocation2 + $0x620] sm:$0xff]
    %v471 = vld [vmem:[#allocation2 + $0x628] sm:$0xff]
    %v472 = vld [vmem:[#allocation2 + $0x630] sm:$0xff]
    %v473 = vld [vmem:[#allocation2 + $0x638] sm:$0xff]
    %v474 = vld [vmem:[#allocation2 + $0x640] sm:$0xff]
    %v475 = vld [vmem:[#allocation2 + $0x648] sm:$0xff]
    %v476 = vld [vmem:[#allocation2 + $0x650] sm:$0xff]
    %v477 = vld [vmem:[#allocation2 + $0x658] sm:$0xff]
    %v478 = vld [vmem:[#allocation2 + $0x660] sm:$0xff]
    %v479 = vld [vmem:[#allocation2 + $0x668] sm:$0xff]
    %v480 = vld [vmem:[#allocation2 + $0x670] sm:$0xff]
    %v481 = vld [vmem:[#allocation2 + $0x678] sm:$0xff]
    %v482 = vld [vmem:[#allocation2 + $0x680] sm:$0xff]
    %v483 = vld [vmem:[#allocation2 + $0x688] sm:$0xff]
    %v484 = vld [vmem:[#allocation2 + $0x690] sm:$0xff]
    %v485 = vld [vmem:[#allocation2 + $0x698] sm:$0xff]
    %v486 = vld [vmem:[#allocation2 + $0x6a0] sm:$0xff]
    %v487 = vld [vmem:[#allocation2 + $0x6a8] sm:$0xff]
    %v488 = vld [vmem:[#allocation2 + $0x6b0] sm:$0xff]
    %v489 = vld [vmem:[#allocation2 + $0x6b8] sm:$0xff]
    %v490 = vld [vmem:[#allocation2 + $0x6c0] sm:$0xff]
    %v491 = vld [vmem:[#allocation2 + $0x6c8] sm:$0xff]
    %v492 = vld [vmem:[#allocation2 + $0x6d0] sm:$0xff]
    %v493 = vld [vmem:[#allocation2 + $0x6d8] sm:$0xff]
    %v494 = vld [vmem:[#allocation2 + $0x6e0] sm:$0xff]
    %v495 = vld [vmem:[#allocation2 + $0x6e8] sm:$0xff]
    %v496 = vld [vmem:[#allocation2 + $0x6f0] sm:$0xff]
    %v497 = vld [vmem:[#allocation2 + $0x6f8] sm:$0xff]
    %v498 = vld [vmem:[#allocation2 + $0x700] sm:$0xff]
    %v499 = vld [vmem:[#allocation2 + $0x708] sm:$0xff]
    %v500 = vld [vmem:[#allocation2 + $0x710] sm:$0xff]
    %v501 = vld [vmem:[#allocation2 + $0x718] sm:$0xff]
    %v502 = vld [vmem:[#allocation2 + $0x720] sm:$0xff]
    %v503 = vld [vmem:[#allocation2 + $0x728] sm:$0xff]
    %v504 = vld [vmem:[#allocation2 + $0x730] sm:$0xff]
    %v505 = vld [vmem:[#allocation2 + $0x738] sm:$0xff]
    %v506 = vld [vmem:[#allocation2 + $0x740] sm:$0xff]
    %v507 = vld [vmem:[#allocation2 + $0x748] sm:$0xff]
    %v508 = vld [vmem:[#allocation2 + $0x750] sm:$0xff]
    %v509 = vld [vmem:[#allocation2 + $0x758] sm:$0xff]
    %v510 = vld [vmem:[#allocation2 + $0x760] sm:$0xff]
    %v511 = vld [vmem:[#allocation2 + $0x768] sm:$0xff]
    %v512 = vld [vmem:[#allocation2 + $0x770] sm:$0xff]
    %v513 = vld [vmem:[#allocation2 + $0x778] sm:$0xff]
    %v514 = vld [vmem:[#allocation2 + $0x780] sm:$0xff]
    %v515 = vld [vmem:[#allocation2 + $0x788] sm:$0xff]
    %v516 = vld [vmem:[#allocation2 + $0x790] sm:$0xff]
    %v517 = vld [vmem:[#allocation2 + $0x798] sm:$0xff]
    %v518 = vld [vmem:[#allocation2 + $0x7a0] sm:$0xff]
    %v519 = vld [vmem:[#allocation2 + $0x7a8] sm:$0xff]
    %v520 = vld [vmem:[#allocation2 + $0x7b0] sm:$0xff]
    %v521 = vld [vmem:[#allocation2 + $0x7b8] sm:$0xff]
    %v522 = vld [vmem:[#allocation2 + $0x7c0] sm:$0xff]
    %v523 = vld [vmem:[#allocation2 + $0x7c8] sm:$0xff]
    %v524 = vld [vmem:[#allocation2 + $0x7d0] sm:$0xff]
    %v525 = vld [vmem:[#allocation2 + $0x7d8] sm:$0xff]
    %v526 = vld [vmem:[#allocation2 + $0x7e0] sm:$0xff]
    %v527 = vld [vmem:[#allocation2 + $0x7e8] sm:$0xff]
    %v528 = vld [vmem:[#allocation2 + $0x7f0] sm:$0xff]
    %v529 = vld [vmem:[#allocation2 + $0x7f8] sm:$0xff]
    %v530 = vld [vmem:[%s2] sm:$0xf]
    %v532 = vlaneseq
    %v533 = vshrl.u32 %v532, 7
    %v534 = vsub.s32 0, %v533
    %v535 = vrot.slane %v530, %v534
    %v536 = vlaneseq
    %v537 = vshrl.u32 %v536, 7
    %v538 = vsub.s32 1, %v537
    %v539 = vrot.slane %v530, %v538
    %v540 = vlaneseq
    %v541 = vshrl.u32 %v540, 7
    %v542 = vsub.s32 2, %v541
    %v543 = vrot.slane %v530, %v542
    %v544 = vlaneseq
    %v545 = vshrl.u32 %v544, 7
    %v546 = vsub.s32 3, %v545
    %v547 = vrot.slane %v530, %v546
    %v808 = vunpack.c.l.b16 %v274
    %v809 = vunpack.c.h.b16 %v274
    %v810 = vunpack.c.l.b16 %v275
    %v811 = vunpack.c.h.b16 %v275
    %v812 = vunpack.c.l.b16 %v276
    %v813 = vunpack.c.h.b16 %v276
    %v814 = vunpack.c.l.b16 %v277
    %v815 = vunpack.c.h.b16 %v277
    %v816 = vunpack.c.l.b16 %v278
    %v817 = vunpack.c.h.b16 %v278
    %v818 = vunpack.c.l.b16 %v279
    %v819 = vunpack.c.h.b16 %v279
    %v820 = vunpack.c.l.b16 %v280
    %v821 = vunpack.c.h.b16 %v280
    %v822 = vunpack.c.l.b16 %v281
    %v823 = vunpack.c.h.b16 %v281
    %v824 = vunpack.c.l.b16 %v282
    %v825 = vunpack.c.h.b16 %v282
    %v826 = vunpack.c.l.b16 %v283
    %v827 = vunpack.c.h.b16 %v283
    %v828 = vunpack.c.l.b16 %v284
    %v829 = vunpack.c.h.b16 %v284
    %v830 = vunpack.c.l.b16 %v285
    %v831 = vunpack.c.h.b16 %v285
    %v832 = vunpack.c.l.b16 %v286
    %v833 = vunpack.c.h.b16 %v286
    %v834 = vunpack.c.l.b16 %v287
    %v835 = vunpack.c.h.b16 %v287
    %v836 = vunpack.c.l.b16 %v288
    %v837 = vunpack.c.h.b16 %v288
    %v838 = vunpack.c.l.b16 %v289
    %v839 = vunpack.c.h.b16 %v289
    %v840 = vunpack.c.l.b16 %v290
    %v841 = vunpack.c.h.b16 %v290
    %v842 = vunpack.c.l.b16 %v291
    %v843 = vunpack.c.h.b16 %v291
    %v844 = vunpack.c.l.b16 %v292
    %v845 = vunpack.c.h.b16 %v292
    %v846 = vunpack.c.l.b16 %v293
    %v847 = vunpack.c.h.b16 %v293
    %v848 = vunpack.c.l.b16 %v294
    %v849 = vunpack.c.h.b16 %v294
    %v850 = vunpack.c.l.b16 %v295
    %v851 = vunpack.c.h.b16 %v295
    %v852 = vunpack.c.l.b16 %v296
    %v853 = vunpack.c.h.b16 %v296
    %v854 = vunpack.c.l.b16 %v297
    %v855 = vunpack.c.h.b16 %v297
    %v856 = vunpack.c.l.b16 %v298
    %v857 = vunpack.c.h.b16 %v298
    %v858 = vunpack.c.l.b16 %v299
    %v859 = vunpack.c.h.b16 %v299
    %v860 = vunpack.c.l.b16 %v300
    %v861 = vunpack.c.h.b16 %v300
    %v862 = vunpack.c.l.b16 %v301
    %v863 = vunpack.c.h.b16 %v301
    %v864 = vunpack.c.l.b16 %v302
    %v865 = vunpack.c.h.b16 %v302
    %v866 = vunpack.c.l.b16 %v303
    %v867 = vunpack.c.h.b16 %v303
    %v868 = vunpack.c.l.b16 %v304
    %v869 = vunpack.c.h.b16 %v304
    %v870 = vunpack.c.l.b16 %v305
    %v871 = vunpack.c.h.b16 %v305
    %v872 = vunpack.c.l.b16 %v306
    %v873 = vunpack.c.h.b16 %v306
    %v874 = vunpack.c.l.b16 %v307
    %v875 = vunpack.c.h.b16 %v307
    %v876 = vunpack.c.l.b16 %v308
    %v877 = vunpack.c.h.b16 %v308
    %v878 = vunpack.c.l.b16 %v309
    %v879 = vunpack.c.h.b16 %v309
    %v880 = vunpack.c.l.b16 %v310
    %v881 = vunpack.c.h.b16 %v310
    %v882 = vunpack.c.l.b16 %v311
    %v883 = vunpack.c.h.b16 %v311
    %v884 = vunpack.c.l.b16 %v312
    %v885 = vunpack.c.h.b16 %v312
    %v886 = vunpack.c.l.b16 %v313
    %v887 = vunpack.c.h.b16 %v313
    %v888 = vunpack.c.l.b16 %v314
    %v889 = vunpack.c.h.b16 %v314
    %v890 = vunpack.c.l.b16 %v315
    %v891 = vunpack.c.h.b16 %v315
    %v892 = vunpack.c.l.b16 %v316
    %v893 = vunpack.c.h.b16 %v316
    %v894 = vunpack.c.l.b16 %v317
    %v895 = vunpack.c.h.b16 %v317
    %v896 = vunpack.c.l.b16 %v318
    %v897 = vunpack.c.h.b16 %v318
    %v898 = vunpack.c.l.b16 %v319
    %v899 = vunpack.c.h.b16 %v319
    %v900 = vunpack.c.l.b16 %v320
    %v901 = vunpack.c.h.b16 %v320
    %v902 = vunpack.c.l.b16 %v321
    %v903 = vunpack.c.h.b16 %v321
    %v904 = vunpack.c.l.b16 %v322
    %v905 = vunpack.c.h.b16 %v322
    %v906 = vunpack.c.l.b16 %v323
    %v907 = vunpack.c.h.b16 %v323
    %v908 = vunpack.c.l.b16 %v324
    %v909 = vunpack.c.h.b16 %v324
    %v910 = vunpack.c.l.b16 %v325
    %v911 = vunpack.c.h.b16 %v325
    %v912 = vunpack.c.l.b16 %v326
    %v913 = vunpack.c.h.b16 %v326
    %v914 = vunpack.c.l.b16 %v327
    %v915 = vunpack.c.h.b16 %v327
    %v916 = vunpack.c.l.b16 %v328
    %v917 = vunpack.c.h.b16 %v328
    %v918 = vunpack.c.l.b16 %v329
    %v919 = vunpack.c.h.b16 %v329
    %v920 = vunpack.c.l.b16 %v330
    %v921 = vunpack.c.h.b16 %v330
    %v922 = vunpack.c.l.b16 %v331
    %v923 = vunpack.c.h.b16 %v331
    %v924 = vunpack.c.l.b16 %v332
    %v925 = vunpack.c.h.b16 %v332
    %v926 = vunpack.c.l.b16 %v333
    %v927 = vunpack.c.h.b16 %v333
    %v928 = vunpack.c.l.b16 %v334
    %v929 = vunpack.c.h.b16 %v334
    %v930 = vunpack.c.l.b16 %v335
    %v931 = vunpack.c.h.b16 %v335
    %v932 = vunpack.c.l.b16 %v336
    %v933 = vunpack.c.h.b16 %v336
    %v934 = vunpack.c.l.b16 %v337
    %v935 = vunpack.c.h.b16 %v337
    %v936 = vunpack.c.l.b16 %v338
    %v937 = vunpack.c.h.b16 %v338
    %v938 = vunpack.c.l.b16 %v339
    %v939 = vunpack.c.h.b16 %v339
    %v940 = vunpack.c.l.b16 %v340
    %v941 = vunpack.c.h.b16 %v340
    %v942 = vunpack.c.l.b16 %v341
    %v943 = vunpack.c.h.b16 %v341
    %v944 = vunpack.c.l.b16 %v342
    %v945 = vunpack.c.h.b16 %v342
    %v946 = vunpack.c.l.b16 %v343
    %v947 = vunpack.c.h.b16 %v343
    %v948 = vunpack.c.l.b16 %v344
    %v949 = vunpack.c.h.b16 %v344
    %v950 = vunpack.c.l.b16 %v345
    %v951 = vunpack.c.h.b16 %v345
    %v952 = vunpack.c.l.b16 %v346
    %v953 = vunpack.c.h.b16 %v346
    %v954 = vunpack.c.l.b16 %v347
    %v955 = vunpack.c.h.b16 %v347
    %v956 = vunpack.c.l.b16 %v348
    %v957 = vunpack.c.h.b16 %v348
    %v958 = vunpack.c.l.b16 %v349
    %v959 = vunpack.c.h.b16 %v349
    %v960 = vunpack.c.l.b16 %v350
    %v961 = vunpack.c.h.b16 %v350
    %v962 = vunpack.c.l.b16 %v351
    %v963 = vunpack.c.h.b16 %v351
    %v964 = vunpack.c.l.b16 %v352
    %v965 = vunpack.c.h.b16 %v352
    %v966 = vunpack.c.l.b16 %v353
    %v967 = vunpack.c.h.b16 %v353
    %v968 = vunpack.c.l.b16 %v354
    %v969 = vunpack.c.h.b16 %v354
    %v970 = vunpack.c.l.b16 %v355
    %v971 = vunpack.c.h.b16 %v355
    %v972 = vunpack.c.l.b16 %v356
    %v973 = vunpack.c.h.b16 %v356
    %v974 = vunpack.c.l.b16 %v357
    %v975 = vunpack.c.h.b16 %v357
    %v976 = vunpack.c.l.b16 %v358
    %v977 = vunpack.c.h.b16 %v358
    %v978 = vunpack.c.l.b16 %v359
    %v979 = vunpack.c.h.b16 %v359
    %v980 = vunpack.c.l.b16 %v360
    %v981 = vunpack.c.h.b16 %v360
    %v982 = vunpack.c.l.b16 %v361
    %v983 = vunpack.c.h.b16 %v361
    %v984 = vunpack.c.l.b16 %v362
    %v985 = vunpack.c.h.b16 %v362
    %v986 = vunpack.c.l.b16 %v363
    %v987 = vunpack.c.h.b16 %v363
    %v988 = vunpack.c.l.b16 %v364
    %v989 = vunpack.c.h.b16 %v364
    %v990 = vunpack.c.l.b16 %v365
    %v991 = vunpack.c.h.b16 %v365
    %v992 = vunpack.c.l.b16 %v366
    %v993 = vunpack.c.h.b16 %v366
    %v994 = vunpack.c.l.b16 %v367
    %v995 = vunpack.c.h.b16 %v367
    %v996 = vunpack.c.l.b16 %v368
    %v997 = vunpack.c.h.b16 %v368
    %v998 = vunpack.c.l.b16 %v369
    %v999 = vunpack.c.h.b16 %v369
    %v1000 = vunpack.c.l.b16 %v370
    %v1001 = vunpack.c.h.b16 %v370
    %v1002 = vunpack.c.l.b16 %v371
    %v1003 = vunpack.c.h.b16 %v371
    %v1004 = vunpack.c.l.b16 %v372
    %v1005 = vunpack.c.h.b16 %v372
    %v1006 = vunpack.c.l.b16 %v373
    %v1007 = vunpack.c.h.b16 %v373
    %v1008 = vunpack.c.l.b16 %v374
    %v1009 = vunpack.c.h.b16 %v374
    %v1010 = vunpack.c.l.b16 %v375
    %v1011 = vunpack.c.h.b16 %v375
    %v1012 = vunpack.c.l.b16 %v376
    %v1013 = vunpack.c.h.b16 %v376
    %v1014 = vunpack.c.l.b16 %v377
    %v1015 = vunpack.c.h.b16 %v377
    %v1016 = vunpack.c.l.b16 %v378
    %v1017 = vunpack.c.h.b16 %v378
    %v1018 = vunpack.c.l.b16 %v379
    %v1019 = vunpack.c.h.b16 %v379
    %v1020 = vunpack.c.l.b16 %v380
    %v1021 = vunpack.c.h.b16 %v380
    %v1022 = vunpack.c.l.b16 %v381
    %v1023 = vunpack.c.h.b16 %v381
    %v1024 = vunpack.c.l.b16 %v382
    %v1025 = vunpack.c.h.b16 %v382
    %v1026 = vunpack.c.l.b16 %v383
    %v1027 = vunpack.c.h.b16 %v383
    %v1028 = vunpack.c.l.b16 %v384
    %v1029 = vunpack.c.h.b16 %v384
    %v1030 = vunpack.c.l.b16 %v385
    %v1031 = vunpack.c.h.b16 %v385
    %v1032 = vunpack.c.l.b16 %v386
    %v1033 = vunpack.c.h.b16 %v386
    %v1034 = vunpack.c.l.b16 %v387
    %v1035 = vunpack.c.h.b16 %v387
    %v1036 = vunpack.c.l.b16 %v388
    %v1037 = vunpack.c.h.b16 %v388
    %v1038 = vunpack.c.l.b16 %v389
    %v1039 = vunpack.c.h.b16 %v389
    %v1040 = vunpack.c.l.b16 %v390
    %v1041 = vunpack.c.h.b16 %v390
    %v1042 = vunpack.c.l.b16 %v391
    %v1043 = vunpack.c.h.b16 %v391
    %v1044 = vunpack.c.l.b16 %v392
    %v1045 = vunpack.c.h.b16 %v392
    %v1046 = vunpack.c.l.b16 %v393
    %v1047 = vunpack.c.h.b16 %v393
    %v1048 = vunpack.c.l.b16 %v394
    %v1049 = vunpack.c.h.b16 %v394
    %v1050 = vunpack.c.l.b16 %v395
    %v1051 = vunpack.c.h.b16 %v395
    %v1052 = vunpack.c.l.b16 %v396
    %v1053 = vunpack.c.h.b16 %v396
    %v1054 = vunpack.c.l.b16 %v397
    %v1055 = vunpack.c.h.b16 %v397
    %v1056 = vunpack.c.l.b16 %v398
    %v1057 = vunpack.c.h.b16 %v398
    %v1058 = vunpack.c.l.b16 %v399
    %v1059 = vunpack.c.h.b16 %v399
    %v1060 = vunpack.c.l.b16 %v400
    %v1061 = vunpack.c.h.b16 %v400
    %v1062 = vunpack.c.l.b16 %v401
    %v1063 = vunpack.c.h.b16 %v401
    %v1064 = vunpack.c.l.b16 %v402
    %v1065 = vunpack.c.h.b16 %v402
    %v1066 = vunpack.c.l.b16 %v403
    %v1067 = vunpack.c.h.b16 %v403
    %v1068 = vunpack.c.l.b16 %v404
    %v1069 = vunpack.c.h.b16 %v404
    %v1070 = vunpack.c.l.b16 %v405
    %v1071 = vunpack.c.h.b16 %v405
    %v1072 = vunpack.c.l.b16 %v406
    %v1073 = vunpack.c.h.b16 %v406
    %v1074 = vunpack.c.l.b16 %v407
    %v1075 = vunpack.c.h.b16 %v407
    %v1076 = vunpack.c.l.b16 %v408
    %v1077 = vunpack.c.h.b16 %v408
    %v1078 = vunpack.c.l.b16 %v409
    %v1079 = vunpack.c.h.b16 %v409
    %v1080 = vunpack.c.l.b16 %v410
    %v1081 = vunpack.c.h.b16 %v410
    %v1082 = vunpack.c.l.b16 %v411
    %v1083 = vunpack.c.h.b16 %v411
    %v1084 = vunpack.c.l.b16 %v412
    %v1085 = vunpack.c.h.b16 %v412
    %v1086 = vunpack.c.l.b16 %v413
    %v1087 = vunpack.c.h.b16 %v413
    %v1088 = vunpack.c.l.b16 %v414
    %v1089 = vunpack.c.h.b16 %v414
    %v1090 = vunpack.c.l.b16 %v415
    %v1091 = vunpack.c.h.b16 %v415
    %v1092 = vunpack.c.l.b16 %v416
    %v1093 = vunpack.c.h.b16 %v416
    %v1094 = vunpack.c.l.b16 %v417
    %v1095 = vunpack.c.h.b16 %v417
    %v1096 = vunpack.c.l.b16 %v418
    %v1097 = vunpack.c.h.b16 %v418
    %v1098 = vunpack.c.l.b16 %v419
    %v1099 = vunpack.c.h.b16 %v419
    %v1100 = vunpack.c.l.b16 %v420
    %v1101 = vunpack.c.h.b16 %v420
    %v1102 = vunpack.c.l.b16 %v421
    %v1103 = vunpack.c.h.b16 %v421
    %v1104 = vunpack.c.l.b16 %v422
    %v1105 = vunpack.c.h.b16 %v422
    %v1106 = vunpack.c.l.b16 %v423
    %v1107 = vunpack.c.h.b16 %v423
    %v1108 = vunpack.c.l.b16 %v424
    %v1109 = vunpack.c.h.b16 %v424
    %v1110 = vunpack.c.l.b16 %v425
    %v1111 = vunpack.c.h.b16 %v425
    %v1112 = vunpack.c.l.b16 %v426
    %v1113 = vunpack.c.h.b16 %v426
    %v1114 = vunpack.c.l.b16 %v427
    %v1115 = vunpack.c.h.b16 %v427
    %v1116 = vunpack.c.l.b16 %v428
    %v1117 = vunpack.c.h.b16 %v428
    %v1118 = vunpack.c.l.b16 %v429
    %v1119 = vunpack.c.h.b16 %v429
    %v1120 = vunpack.c.l.b16 %v430
    %v1121 = vunpack.c.h.b16 %v430
    %v1122 = vunpack.c.l.b16 %v431
    %v1123 = vunpack.c.h.b16 %v431
    %v1124 = vunpack.c.l.b16 %v432
    %v1125 = vunpack.c.h.b16 %v432
    %v1126 = vunpack.c.l.b16 %v433
    %v1127 = vunpack.c.h.b16 %v433
    %v1128 = vunpack.c.l.b16 %v434
    %v1129 = vunpack.c.h.b16 %v434
    %v1130 = vunpack.c.l.b16 %v435
    %v1131 = vunpack.c.h.b16 %v435
    %v1132 = vunpack.c.l.b16 %v436
    %v1133 = vunpack.c.h.b16 %v436
    %v1134 = vunpack.c.l.b16 %v437
    %v1135 = vunpack.c.h.b16 %v437
    %v1136 = vunpack.c.l.b16 %v438
    %v1137 = vunpack.c.h.b16 %v438
    %v1138 = vunpack.c.l.b16 %v439
    %v1139 = vunpack.c.h.b16 %v439
    %v1140 = vunpack.c.l.b16 %v440
    %v1141 = vunpack.c.h.b16 %v440
    %v1142 = vunpack.c.l.b16 %v441
    %v1143 = vunpack.c.h.b16 %v441
    %v1144 = vunpack.c.l.b16 %v442
    %v1145 = vunpack.c.h.b16 %v442
    %v1146 = vunpack.c.l.b16 %v443
    %v1147 = vunpack.c.h.b16 %v443
    %v1148 = vunpack.c.l.b16 %v444
    %v1149 = vunpack.c.h.b16 %v444
    %v1150 = vunpack.c.l.b16 %v445
    %v1151 = vunpack.c.h.b16 %v445
    %v1152 = vunpack.c.l.b16 %v446
    %v1153 = vunpack.c.h.b16 %v446
    %v1154 = vunpack.c.l.b16 %v447
    %v1155 = vunpack.c.h.b16 %v447
    %v1156 = vunpack.c.l.b16 %v448
    %v1157 = vunpack.c.h.b16 %v448
    %v1158 = vunpack.c.l.b16 %v449
    %v1159 = vunpack.c.h.b16 %v449
    %v1160 = vunpack.c.l.b16 %v450
    %v1161 = vunpack.c.h.b16 %v450
    %v1162 = vunpack.c.l.b16 %v451
    %v1163 = vunpack.c.h.b16 %v451
    %v1164 = vunpack.c.l.b16 %v452
    %v1165 = vunpack.c.h.b16 %v452
    %v1166 = vunpack.c.l.b16 %v453
    %v1167 = vunpack.c.h.b16 %v453
    %v1168 = vunpack.c.l.b16 %v454
    %v1169 = vunpack.c.h.b16 %v454
    %v1170 = vunpack.c.l.b16 %v455
    %v1171 = vunpack.c.h.b16 %v455
    %v1172 = vunpack.c.l.b16 %v456
    %v1173 = vunpack.c.h.b16 %v456
    %v1174 = vunpack.c.l.b16 %v457
    %v1175 = vunpack.c.h.b16 %v457
    %v1176 = vunpack.c.l.b16 %v458
    %v1177 = vunpack.c.h.b16 %v458
    %v1178 = vunpack.c.l.b16 %v459
    %v1179 = vunpack.c.h.b16 %v459
    %v1180 = vunpack.c.l.b16 %v460
    %v1181 = vunpack.c.h.b16 %v460
    %v1182 = vunpack.c.l.b16 %v461
    %v1183 = vunpack.c.h.b16 %v461
    %v1184 = vunpack.c.l.b16 %v462
    %v1185 = vunpack.c.h.b16 %v462
    %v1186 = vunpack.c.l.b16 %v463
    %v1187 = vunpack.c.h.b16 %v463
    %v1188 = vunpack.c.l.b16 %v464
    %v1189 = vunpack.c.h.b16 %v464
    %v1190 = vunpack.c.l.b16 %v465
    %v1191 = vunpack.c.h.b16 %v465
    %v1192 = vunpack.c.l.b16 %v466
    %v1193 = vunpack.c.h.b16 %v466
    %v1194 = vunpack.c.l.b16 %v467
    %v1195 = vunpack.c.h.b16 %v467
    %v1196 = vunpack.c.l.b16 %v468
    %v1197 = vunpack.c.h.b16 %v468
    %v1198 = vunpack.c.l.b16 %v469
    %v1199 = vunpack.c.h.b16 %v469
    %v1200 = vunpack.c.l.b16 %v470
    %v1201 = vunpack.c.h.b16 %v470
    %v1202 = vunpack.c.l.b16 %v471
    %v1203 = vunpack.c.h.b16 %v471
    %v1204 = vunpack.c.l.b16 %v472
    %v1205 = vunpack.c.h.b16 %v472
    %v1206 = vunpack.c.l.b16 %v473
    %v1207 = vunpack.c.h.b16 %v473
    %v1208 = vunpack.c.l.b16 %v474
    %v1209 = vunpack.c.h.b16 %v474
    %v1210 = vunpack.c.l.b16 %v475
    %v1211 = vunpack.c.h.b16 %v475
    %v1212 = vunpack.c.l.b16 %v476
    %v1213 = vunpack.c.h.b16 %v476
    %v1214 = vunpack.c.l.b16 %v477
    %v1215 = vunpack.c.h.b16 %v477
    %v1216 = vunpack.c.l.b16 %v478
    %v1217 = vunpack.c.h.b16 %v478
    %v1218 = vunpack.c.l.b16 %v479
    %v1219 = vunpack.c.h.b16 %v479
    %v1220 = vunpack.c.l.b16 %v480
    %v1221 = vunpack.c.h.b16 %v480
    %v1222 = vunpack.c.l.b16 %v481
    %v1223 = vunpack.c.h.b16 %v481
    %v1224 = vunpack.c.l.b16 %v482
    %v1225 = vunpack.c.h.b16 %v482
    %v1226 = vunpack.c.l.b16 %v483
    %v1227 = vunpack.c.h.b16 %v483
    %v1228 = vunpack.c.l.b16 %v484
    %v1229 = vunpack.c.h.b16 %v484
    %v1230 = vunpack.c.l.b16 %v485
    %v1231 = vunpack.c.h.b16 %v485
    %v1232 = vunpack.c.l.b16 %v486
    %v1233 = vunpack.c.h.b16 %v486
    %v1234 = vunpack.c.l.b16 %v487
    %v1235 = vunpack.c.h.b16 %v487
    %v1236 = vunpack.c.l.b16 %v488
    %v1237 = vunpack.c.h.b16 %v488
    %v1238 = vunpack.c.l.b16 %v489
    %v1239 = vunpack.c.h.b16 %v489
    %v1240 = vunpack.c.l.b16 %v490
    %v1241 = vunpack.c.h.b16 %v490
    %v1242 = vunpack.c.l.b16 %v491
    %v1243 = vunpack.c.h.b16 %v491
    %v1244 = vunpack.c.l.b16 %v492
    %v1245 = vunpack.c.h.b16 %v492
    %v1246 = vunpack.c.l.b16 %v493
    %v1247 = vunpack.c.h.b16 %v493
    %v1248 = vunpack.c.l.b16 %v494
    %v1249 = vunpack.c.h.b16 %v494
    %v1250 = vunpack.c.l.b16 %v495
    %v1251 = vunpack.c.h.b16 %v495
    %v1252 = vunpack.c.l.b16 %v496
    %v1253 = vunpack.c.h.b16 %v496
    %v1254 = vunpack.c.l.b16 %v497
    %v1255 = vunpack.c.h.b16 %v497
    %v1256 = vunpack.c.l.b16 %v498
    %v1257 = vunpack.c.h.b16 %v498
    %v1258 = vunpack.c.l.b16 %v499
    %v1259 = vunpack.c.h.b16 %v499
    %v1260 = vunpack.c.l.b16 %v500
    %v1261 = vunpack.c.h.b16 %v500
    %v1262 = vunpack.c.l.b16 %v501
    %v1263 = vunpack.c.h.b16 %v501
    %v1264 = vunpack.c.l.b16 %v502
    %v1265 = vunpack.c.h.b16 %v502
    %v1266 = vunpack.c.l.b16 %v503
    %v1267 = vunpack.c.h.b16 %v503
    %v1268 = vunpack.c.l.b16 %v504
    %v1269 = vunpack.c.h.b16 %v504
    %v1270 = vunpack.c.l.b16 %v505
    %v1271 = vunpack.c.h.b16 %v505
    %v1272 = vunpack.c.l.b16 %v506
    %v1273 = vunpack.c.h.b16 %v506
    %v1274 = vunpack.c.l.b16 %v507
    %v1275 = vunpack.c.h.b16 %v507
    %v1276 = vunpack.c.l.b16 %v508
    %v1277 = vunpack.c.h.b16 %v508
    %v1278 = vunpack.c.l.b16 %v509
    %v1279 = vunpack.c.h.b16 %v509
    %v1280 = vunpack.c.l.b16 %v510
    %v1281 = vunpack.c.h.b16 %v510
    %v1282 = vunpack.c.l.b16 %v511
    %v1283 = vunpack.c.h.b16 %v511
    %v1284 = vunpack.c.l.b16 %v512
    %v1285 = vunpack.c.h.b16 %v512
    %v1286 = vunpack.c.l.b16 %v513
    %v1287 = vunpack.c.h.b16 %v513
    %v1288 = vunpack.c.l.b16 %v514
    %v1289 = vunpack.c.h.b16 %v514
    %v1290 = vunpack.c.l.b16 %v515
    %v1291 = vunpack.c.h.b16 %v515
    %v1292 = vunpack.c.l.b16 %v516
    %v1293 = vunpack.c.h.b16 %v516
    %v1294 = vunpack.c.l.b16 %v517
    %v1295 = vunpack.c.h.b16 %v517
    %v1296 = vunpack.c.l.b16 %v518
    %v1297 = vunpack.c.h.b16 %v518
    %v1298 = vunpack.c.l.b16 %v519
    %v1299 = vunpack.c.h.b16 %v519
    %v1300 = vunpack.c.l.b16 %v520
    %v1301 = vunpack.c.h.b16 %v520
    %v1302 = vunpack.c.l.b16 %v521
    %v1303 = vunpack.c.h.b16 %v521
    %v1304 = vunpack.c.l.b16 %v522
    %v1305 = vunpack.c.h.b16 %v522
    %v1306 = vunpack.c.l.b16 %v523
    %v1307 = vunpack.c.h.b16 %v523
    %v1308 = vunpack.c.l.b16 %v524
    %v1309 = vunpack.c.h.b16 %v524
    %v1310 = vunpack.c.l.b16 %v525
    %v1311 = vunpack.c.h.b16 %v525
    %v1312 = vunpack.c.l.b16 %v526
    %v1313 = vunpack.c.h.b16 %v526
    %v1314 = vunpack.c.l.b16 %v527
    %v1315 = vunpack.c.h.b16 %v527
    %v1316 = vunpack.c.l.b16 %v528
    %v1317 = vunpack.c.h.b16 %v528
    %v1318 = vunpack.c.l.b16 %v529
    %v1319 = vunpack.c.h.b16 %v529
    %v1320 = vpack.c.b16 %v812, %v808
    %v1321 = vpack.c.b16 %v813, %v809
    %v1322 = vpack.c.b16 %v814, %v810
    %v1323 = vpack.c.b16 %v815, %v811
    %v1324 = vpack.c.b16 %v820, %v816
    %v1325 = vpack.c.b16 %v821, %v817
    %v1326 = vpack.c.b16 %v822, %v818
    %v1327 = vpack.c.b16 %v823, %v819
    %v1328 = vpack.c.b16 %v828, %v824
    %v1329 = vpack.c.b16 %v829, %v825
    %v1330 = vpack.c.b16 %v830, %v826
    %v1331 = vpack.c.b16 %v831, %v827
    %v1332 = vpack.c.b16 %v836, %v832
    %v1333 = vpack.c.b16 %v837, %v833
    %v1334 = vpack.c.b16 %v838, %v834
    %v1335 = vpack.c.b16 %v839, %v835
    %v1336 = vpack.c.b16 %v844, %v840
    %v1337 = vpack.c.b16 %v845, %v841
    %v1338 = vpack.c.b16 %v846, %v842
    %v1339 = vpack.c.b16 %v847, %v843
    %v1340 = vpack.c.b16 %v852, %v848
    %v1341 = vpack.c.b16 %v853, %v849
    %v1342 = vpack.c.b16 %v854, %v850
    %v1343 = vpack.c.b16 %v855, %v851
    %v1344 = vpack.c.b16 %v860, %v856
    %v1345 = vpack.c.b16 %v861, %v857
    %v1346 = vpack.c.b16 %v862, %v858
    %v1347 = vpack.c.b16 %v863, %v859
    %v1348 = vpack.c.b16 %v868, %v864
    %v1349 = vpack.c.b16 %v869, %v865
    %v1350 = vpack.c.b16 %v870, %v866
    %v1351 = vpack.c.b16 %v871, %v867
    %v1352 = vpack.c.b16 %v876, %v872
    %v1353 = vpack.c.b16 %v877, %v873
    %v1354 = vpack.c.b16 %v878, %v874
    %v1355 = vpack.c.b16 %v879, %v875
    %v1356 = vpack.c.b16 %v884, %v880
    %v1357 = vpack.c.b16 %v885, %v881
    %v1358 = vpack.c.b16 %v886, %v882
    %v1359 = vpack.c.b16 %v887, %v883
    %v1360 = vpack.c.b16 %v892, %v888
    %v1361 = vpack.c.b16 %v893, %v889
    %v1362 = vpack.c.b16 %v894, %v890
    %v1363 = vpack.c.b16 %v895, %v891
    %v1364 = vpack.c.b16 %v900, %v896
    %v1365 = vpack.c.b16 %v901, %v897
    %v1366 = vpack.c.b16 %v902, %v898
    %v1367 = vpack.c.b16 %v903, %v899
    %v1368 = vpack.c.b16 %v908, %v904
    %v1369 = vpack.c.b16 %v909, %v905
    %v1370 = vpack.c.b16 %v910, %v906
    %v1371 = vpack.c.b16 %v911, %v907
    %v1372 = vpack.c.b16 %v916, %v912
    %v1373 = vpack.c.b16 %v917, %v913
    %v1374 = vpack.c.b16 %v918, %v914
    %v1375 = vpack.c.b16 %v919, %v915
    %v1376 = vpack.c.b16 %v924, %v920
    %v1377 = vpack.c.b16 %v925, %v921
    %v1378 = vpack.c.b16 %v926, %v922
    %v1379 = vpack.c.b16 %v927, %v923
    %v1380 = vpack.c.b16 %v932, %v928
    %v1381 = vpack.c.b16 %v933, %v929
    %v1382 = vpack.c.b16 %v934, %v930
    %v1383 = vpack.c.b16 %v935, %v931
    %v1384 = vpack.c.b16 %v940, %v936
    %v1385 = vpack.c.b16 %v941, %v937
    %v1386 = vpack.c.b16 %v942, %v938
    %v1387 = vpack.c.b16 %v943, %v939
    %v1388 = vpack.c.b16 %v948, %v944
    %v1389 = vpack.c.b16 %v949, %v945
    %v1390 = vpack.c.b16 %v950, %v946
    %v1391 = vpack.c.b16 %v951, %v947
    %v1392 = vpack.c.b16 %v956, %v952
    %v1393 = vpack.c.b16 %v957, %v953
    %v1394 = vpack.c.b16 %v958, %v954
    %v1395 = vpack.c.b16 %v959, %v955
    %v1396 = vpack.c.b16 %v964, %v960
    %v1397 = vpack.c.b16 %v965, %v961
    %v1398 = vpack.c.b16 %v966, %v962
    %v1399 = vpack.c.b16 %v967, %v963
    %v1400 = vpack.c.b16 %v972, %v968
    %v1401 = vpack.c.b16 %v973, %v969
    %v1402 = vpack.c.b16 %v974, %v970
    %v1403 = vpack.c.b16 %v975, %v971
    %v1404 = vpack.c.b16 %v980, %v976
    %v1405 = vpack.c.b16 %v981, %v977
    %v1406 = vpack.c.b16 %v982, %v978
    %v1407 = vpack.c.b16 %v983, %v979
    %v1408 = vpack.c.b16 %v988, %v984
    %v1409 = vpack.c.b16 %v989, %v985
    %v1410 = vpack.c.b16 %v990, %v986
    %v1411 = vpack.c.b16 %v991, %v987
    %v1412 = vpack.c.b16 %v996, %v992
    %v1413 = vpack.c.b16 %v997, %v993
    %v1414 = vpack.c.b16 %v998, %v994
    %v1415 = vpack.c.b16 %v999, %v995
    %v1416 = vpack.c.b16 %v1004, %v1000
    %v1417 = vpack.c.b16 %v1005, %v1001
    %v1418 = vpack.c.b16 %v1006, %v1002
    %v1419 = vpack.c.b16 %v1007, %v1003
    %v1420 = vpack.c.b16 %v1012, %v1008
    %v1421 = vpack.c.b16 %v1013, %v1009
    %v1422 = vpack.c.b16 %v1014, %v1010
    %v1423 = vpack.c.b16 %v1015, %v1011
    %v1424 = vpack.c.b16 %v1020, %v1016
    %v1425 = vpack.c.b16 %v1021, %v1017
    %v1426 = vpack.c.b16 %v1022, %v1018
    %v1427 = vpack.c.b16 %v1023, %v1019
    %v1428 = vpack.c.b16 %v1028, %v1024
    %v1429 = vpack.c.b16 %v1029, %v1025
    %v1430 = vpack.c.b16 %v1030, %v1026
    %v1431 = vpack.c.b16 %v1031, %v1027
    %v1432 = vpack.c.b16 %v1036, %v1032
    %v1433 = vpack.c.b16 %v1037, %v1033
    %v1434 = vpack.c.b16 %v1038, %v1034
    %v1435 = vpack.c.b16 %v1039, %v1035
    %v1436 = vpack.c.b16 %v1044, %v1040
    %v1437 = vpack.c.b16 %v1045, %v1041
    %v1438 = vpack.c.b16 %v1046, %v1042
    %v1439 = vpack.c.b16 %v1047, %v1043
    %v1440 = vpack.c.b16 %v1052, %v1048
    %v1441 = vpack.c.b16 %v1053, %v1049
    %v1442 = vpack.c.b16 %v1054, %v1050
    %v1443 = vpack.c.b16 %v1055, %v1051
    %v1444 = vpack.c.b16 %v1060, %v1056
    %v1445 = vpack.c.b16 %v1061, %v1057
    %v1446 = vpack.c.b16 %v1062, %v1058
    %v1447 = vpack.c.b16 %v1063, %v1059
    %v1448 = vpack.c.b16 %v1068, %v1064
    %v1449 = vpack.c.b16 %v1069, %v1065
    %v1450 = vpack.c.b16 %v1070, %v1066
    %v1451 = vpack.c.b16 %v1071, %v1067
    %v1452 = vpack.c.b16 %v1076, %v1072
    %v1453 = vpack.c.b16 %v1077, %v1073
    %v1454 = vpack.c.b16 %v1078, %v1074
    %v1455 = vpack.c.b16 %v1079, %v1075
    %v1456 = vpack.c.b16 %v1084, %v1080
    %v1457 = vpack.c.b16 %v1085, %v1081
    %v1458 = vpack.c.b16 %v1086, %v1082
    %v1459 = vpack.c.b16 %v1087, %v1083
    %v1460 = vpack.c.b16 %v1092, %v1088
    %v1461 = vpack.c.b16 %v1093, %v1089
    %v1462 = vpack.c.b16 %v1094, %v1090
    %v1463 = vpack.c.b16 %v1095, %v1091
    %v1464 = vpack.c.b16 %v1100, %v1096
    %v1465 = vpack.c.b16 %v1101, %v1097
    %v1466 = vpack.c.b16 %v1102, %v1098
    %v1467 = vpack.c.b16 %v1103, %v1099
    %v1468 = vpack.c.b16 %v1108, %v1104
    %v1469 = vpack.c.b16 %v1109, %v1105
    %v1470 = vpack.c.b16 %v1110, %v1106
    %v1471 = vpack.c.b16 %v1111, %v1107
    %v1472 = vpack.c.b16 %v1116, %v1112
    %v1473 = vpack.c.b16 %v1117, %v1113
    %v1474 = vpack.c.b16 %v1118, %v1114
    %v1475 = vpack.c.b16 %v1119, %v1115
    %v1476 = vpack.c.b16 %v1124, %v1120
    %v1477 = vpack.c.b16 %v1125, %v1121
    %v1478 = vpack.c.b16 %v1126, %v1122
    %v1479 = vpack.c.b16 %v1127, %v1123
    %v1480 = vpack.c.b16 %v1132, %v1128
    %v1481 = vpack.c.b16 %v1133, %v1129
    %v1482 = vpack.c.b16 %v1134, %v1130
    %v1483 = vpack.c.b16 %v1135, %v1131
    %v1484 = vpack.c.b16 %v1140, %v1136
    %v1485 = vpack.c.b16 %v1141, %v1137
    %v1486 = vpack.c.b16 %v1142, %v1138
    %v1487 = vpack.c.b16 %v1143, %v1139
    %v1488 = vpack.c.b16 %v1148, %v1144
    %v1489 = vpack.c.b16 %v1149, %v1145
    %v1490 = vpack.c.b16 %v1150, %v1146
    %v1491 = vpack.c.b16 %v1151, %v1147
    %v1492 = vpack.c.b16 %v1156, %v1152
    %v1493 = vpack.c.b16 %v1157, %v1153
    %v1494 = vpack.c.b16 %v1158, %v1154
    %v1495 = vpack.c.b16 %v1159, %v1155
    %v1496 = vpack.c.b16 %v1164, %v1160
    %v1497 = vpack.c.b16 %v1165, %v1161
    %v1498 = vpack.c.b16 %v1166, %v1162
    %v1499 = vpack.c.b16 %v1167, %v1163
    %v1500 = vpack.c.b16 %v1172, %v1168
    %v1501 = vpack.c.b16 %v1173, %v1169
    %v1502 = vpack.c.b16 %v1174, %v1170
    %v1503 = vpack.c.b16 %v1175, %v1171
    %v1504 = vpack.c.b16 %v1180, %v1176
    %v1505 = vpack.c.b16 %v1181, %v1177
    %v1506 = vpack.c.b16 %v1182, %v1178
    %v1507 = vpack.c.b16 %v1183, %v1179
    %v1508 = vpack.c.b16 %v1188, %v1184
    %v1509 = vpack.c.b16 %v1189, %v1185
    %v1510 = vpack.c.b16 %v1190, %v1186
    %v1511 = vpack.c.b16 %v1191, %v1187
    %v1512 = vpack.c.b16 %v1196, %v1192
    %v1513 = vpack.c.b16 %v1197, %v1193
    %v1514 = vpack.c.b16 %v1198, %v1194
    %v1515 = vpack.c.b16 %v1199, %v1195
    %v1516 = vpack.c.b16 %v1204, %v1200
    %v1517 = vpack.c.b16 %v1205, %v1201
    %v1518 = vpack.c.b16 %v1206, %v1202
    %v1519 = vpack.c.b16 %v1207, %v1203
    %v1520 = vpack.c.b16 %v1212, %v1208
    %v1521 = vpack.c.b16 %v1213, %v1209
    %v1522 = vpack.c.b16 %v1214, %v1210
    %v1523 = vpack.c.b16 %v1215, %v1211
    %v1524 = vpack.c.b16 %v1220, %v1216
    %v1525 = vpack.c.b16 %v1221, %v1217
    %v1526 = vpack.c.b16 %v1222, %v1218
    %v1527 = vpack.c.b16 %v1223, %v1219
    %v1528 = vpack.c.b16 %v1228, %v1224
    %v1529 = vpack.c.b16 %v1229, %v1225
    %v1530 = vpack.c.b16 %v1230, %v1226
    %v1531 = vpack.c.b16 %v1231, %v1227
    %v1532 = vpack.c.b16 %v1236, %v1232
    %v1533 = vpack.c.b16 %v1237, %v1233
    %v1534 = vpack.c.b16 %v1238, %v1234
    %v1535 = vpack.c.b16 %v1239, %v1235
    %v1536 = vpack.c.b16 %v1244, %v1240
    %v1537 = vpack.c.b16 %v1245, %v1241
    %v1538 = vpack.c.b16 %v1246, %v1242
    %v1539 = vpack.c.b16 %v1247, %v1243
    %v1540 = vpack.c.b16 %v1252, %v1248
    %v1541 = vpack.c.b16 %v1253, %v1249
    %v1542 = vpack.c.b16 %v1254, %v1250
    %v1543 = vpack.c.b16 %v1255, %v1251
    %v1544 = vpack.c.b16 %v1260, %v1256
    %v1545 = vpack.c.b16 %v1261, %v1257
    %v1546 = vpack.c.b16 %v1262, %v1258
    %v1547 = vpack.c.b16 %v1263, %v1259
    %v1548 = vpack.c.b16 %v1268, %v1264
    %v1549 = vpack.c.b16 %v1269, %v1265
    %v1550 = vpack.c.b16 %v1270, %v1266
    %v1551 = vpack.c.b16 %v1271, %v1267
    %v1552 = vpack.c.b16 %v1276, %v1272
    %v1553 = vpack.c.b16 %v1277, %v1273
    %v1554 = vpack.c.b16 %v1278, %v1274
    %v1555 = vpack.c.b16 %v1279, %v1275
    %v1556 = vpack.c.b16 %v1284, %v1280
    %v1557 = vpack.c.b16 %v1285, %v1281
    %v1558 = vpack.c.b16 %v1286, %v1282
    %v1559 = vpack.c.b16 %v1287, %v1283
    %v1560 = vpack.c.b16 %v1292, %v1288
    %v1561 = vpack.c.b16 %v1293, %v1289
    %v1562 = vpack.c.b16 %v1294, %v1290
    %v1563 = vpack.c.b16 %v1295, %v1291
    %v1564 = vpack.c.b16 %v1300, %v1296
    %v1565 = vpack.c.b16 %v1301, %v1297
    %v1566 = vpack.c.b16 %v1302, %v1298
    %v1567 = vpack.c.b16 %v1303, %v1299
    %v1568 = vpack.c.b16 %v1308, %v1304
    %v1569 = vpack.c.b16 %v1309, %v1305
    %v1570 = vpack.c.b16 %v1310, %v1306
    %v1571 = vpack.c.b16 %v1311, %v1307
    %v1572 = vpack.c.b16 %v1316, %v1312
    %v1573 = vpack.c.b16 %v1317, %v1313
    %v1574 = vpack.c.b16 %v1318, %v1314
    %v1575 = vpack.c.b16 %v1319, %v1315
    %1832 = vmatprep.subr.bf16.mxu0 %v1321
    %1833 = vmatpush1.bf16.msra.mxu0 %v1320
    %1834 = vmatprep.subr.bf16.mxu0 %v1325
    %1835 = vmatpush1.bf16.msra.mxu0 %v1324
    %1836 = vmatprep.subr.bf16.mxu0 %v1329
    %1837 = vmatpush1.bf16.msra.mxu0 %v1328
    %1838 = vmatprep.subr.bf16.mxu0 %v1333
    %1839 = vmatpush1.bf16.msra.mxu0 %v1332
    %1840 = vmatprep.subr.bf16.mxu0 %v1337
    %1841 = vmatpush1.bf16.msra.mxu0 %v1336
    %1842 = vmatprep.subr.bf16.mxu0 %v1341
    %1843 = vmatpush1.bf16.msra.mxu0 %v1340
    %1844 = vmatprep.subr.bf16.mxu0 %v1345
    %1845 = vmatpush1.bf16.msra.mxu0 %v1344
    %1846 = vmatprep.subr.bf16.mxu0 %v1349
    %1847 = vmatpush1.bf16.msra.mxu0 %v1348
    %1848 = vmatprep.subr.bf16.mxu0 %v1353
    %1849 = vmatpush1.bf16.msra.mxu0 %v1352
    %1850 = vmatprep.subr.bf16.mxu0 %v1357
    %1851 = vmatpush1.bf16.msra.mxu0 %v1356
    %1852 = vmatprep.subr.bf16.mxu0 %v1361
    %1853 = vmatpush1.bf16.msra.mxu0 %v1360
    %1854 = vmatprep.subr.bf16.mxu0 %v1365
    %1855 = vmatpush1.bf16.msra.mxu0 %v1364
    %1856 = vmatprep.subr.bf16.mxu0 %v1369
    %1857 = vmatpush1.bf16.msra.mxu0 %v1368
    %1858 = vmatprep.subr.bf16.mxu0 %v1373
    %1859 = vmatpush1.bf16.msra.mxu0 %v1372
    %1860 = vmatprep.subr.bf16.mxu0 %v1377
    %1861 = vmatpush1.bf16.msra.mxu0 %v1376
    %1862 = vmatprep.subr.bf16.mxu0 %v1381
    %1863 = vmatpush1.bf16.msra.mxu0 %v1380
    %1864 = vmatprep.mubr.bf16.mxu0 %v267
    %1865 = vmatmul.mubr.bf16.gmra.mrb[0].mxu0 %v266
    %v1866 = vpop.f32.mrb[0].mxu0
    %v1867 = vadd.f32 %v535, %v1866
    %v1868 = vpop.f32.mrb[0].mxu0
    %v1869 = vadd.f32 %v539, %v1868
    %v1870 = vpop.f32.mrb[0].mxu0
    %v1871 = vadd.f32 %v535, %v1870
    %v1872 = vpop.f32.mrb[0].mxu0
    %v1873 = vadd.f32 %v539, %v1872
    %1874 = vdwg.mxu0
    %1875 = vmatprep.subr.bf16.mxu0 %v1385
    %1876 = vmatpush1.bf16.msra.mxu0 %v1384
    %1877 = vmatprep.subr.bf16.mxu0 %v1389
    %1878 = vmatpush1.bf16.msra.mxu0 %v1388
    %1879 = vmatprep.subr.bf16.mxu0 %v1393
    %1880 = vmatpush1.bf16.msra.mxu0 %v1392
    %1881 = vmatprep.subr.bf16.mxu0 %v1397
    %1882 = vmatpush1.bf16.msra.mxu0 %v1396
    %1883 = vmatprep.subr.bf16.mxu0 %v1401
    %1884 = vmatpush1.bf16.msra.mxu0 %v1400
    %1885 = vmatprep.subr.bf16.mxu0 %v1405
    %1886 = vmatpush1.bf16.msra.mxu0 %v1404
    %1887 = vmatprep.subr.bf16.mxu0 %v1409
    %1888 = vmatpush1.bf16.msra.mxu0 %v1408
    %1889 = vmatprep.subr.bf16.mxu0 %v1413
    %1890 = vmatpush1.bf16.msra.mxu0 %v1412
    %1891 = vmatprep.subr.bf16.mxu0 %v1417
    %1892 = vmatpush1.bf16.msra.mxu0 %v1416
    %1893 = vmatprep.subr.bf16.mxu0 %v1421
    %1894 = vmatpush1.bf16.msra.mxu0 %v1420
    %1895 = vmatprep.subr.bf16.mxu0 %v1425
    %1896 = vmatpush1.bf16.msra.mxu0 %v1424
    %1897 = vmatprep.subr.bf16.mxu0 %v1429
    %1898 = vmatpush1.bf16.msra.mxu0 %v1428
    %1899 = vmatprep.subr.bf16.mxu0 %v1433
    %1900 = vmatpush1.bf16.msra.mxu0 %v1432
    %1901 = vmatprep.subr.bf16.mxu0 %v1437
    %1902 = vmatpush1.bf16.msra.mxu0 %v1436
    %1903 = vmatprep.subr.bf16.mxu0 %v1441
    %1904 = vmatpush1.bf16.msra.mxu0 %v1440
    %1905 = vmatprep.subr.bf16.mxu0 %v1445
    %1906 = vmatpush1.bf16.msra.mxu0 %v1444
    %1907 = vmatprep.mubr.bf16.mxu0 %v269
    %1908 = vmatmul.mubr.bf16.gmra.mrb[0].mxu0 %v268
    %v1909 = vpop.f32.mrb[0].mxu0
    %v1910 = vadd.f32 %v1867, %v1909
    %v1911 = vpop.f32.mrb[0].mxu0
    %v1912 = vadd.f32 %v1869, %v1911
    %v1913 = vpop.f32.mrb[0].mxu0
    %v1914 = vadd.f32 %v1871, %v1913
    %v1915 = vpop.f32.mrb[0].mxu0
    %v1916 = vadd.f32 %v1873, %v1915
    %1917 = vdwg.mxu0
    %1918 = vmatprep.subr.bf16.mxu0 %v1449
    %1919 = vmatpush1.bf16.msra.mxu0 %v1448
    %1920 = vmatprep.subr.bf16.mxu0 %v1453
    %1921 = vmatpush1.bf16.msra.mxu0 %v1452
    %1922 = vmatprep.subr.bf16.mxu0 %v1457
    %1923 = vmatpush1.bf16.msra.mxu0 %v1456
    %1924 = vmatprep.subr.bf16.mxu0 %v1461
    %1925 = vmatpush1.bf16.msra.mxu0 %v1460
    %1926 = vmatprep.subr.bf16.mxu0 %v1465
    %1927 = vmatpush1.bf16.msra.mxu0 %v1464
    %1928 = vmatprep.subr.bf16.mxu0 %v1469
    %1929 = vmatpush1.bf16.msra.mxu0 %v1468
    %1930 = vmatprep.subr.bf16.mxu0 %v1473
    %1931 = vmatpush1.bf16.msra.mxu0 %v1472
    %1932 = vmatprep.subr.bf16.mxu0 %v1477
    %1933 = vmatpush1.bf16.msra.mxu0 %v1476
    %1934 = vmatprep.subr.bf16.mxu0 %v1481
    %1935 = vmatpush1.bf16.msra.mxu0 %v1480
    %1936 = vmatprep.subr.bf16.mxu0 %v1485
    %1937 = vmatpush1.bf16.msra.mxu0 %v1484
    %1938 = vmatprep.subr.bf16.mxu0 %v1489
    %1939 = vmatpush1.bf16.msra.mxu0 %v1488
    %1940 = vmatprep.subr.bf16.mxu0 %v1493
    %1941 = vmatpush1.bf16.msra.mxu0 %v1492
    %1942 = vmatprep.subr.bf16.mxu0 %v1497
    %1943 = vmatpush1.bf16.msra.mxu0 %v1496
    %1944 = vmatprep.subr.bf16.mxu0 %v1501
    %1945 = vmatpush1.bf16.msra.mxu0 %v1500
    %1946 = vmatprep.subr.bf16.mxu0 %v1505
    %1947 = vmatpush1.bf16.msra.mxu0 %v1504
    %1948 = vmatprep.subr.bf16.mxu0 %v1509
    %1949 = vmatpush1.bf16.msra.mxu0 %v1508
    %1950 = vmatprep.mubr.bf16.mxu0 %v271
    %1951 = vmatmul.mubr.bf16.gmra.mrb[0].mxu0 %v270
    %v1952 = vpop.f32.mrb[0].mxu0
    %v1953 = vadd.f32 %v1910, %v1952
    %v1954 = vpop.f32.mrb[0].mxu0
    %v1955 = vadd.f32 %v1912, %v1954
    %v1956 = vpop.f32.mrb[0].mxu0
    %v1957 = vadd.f32 %v1914, %v1956
    %v1958 = vpop.f32.mrb[0].mxu0
    %v1959 = vadd.f32 %v1916, %v1958
    %1960 = vdwg.mxu0
    %1961 = vmatprep.subr.bf16.mxu0 %v1513
    %1962 = vmatpush1.bf16.msra.mxu0 %v1512
    %1963 = vmatprep.subr.bf16.mxu0 %v1517
    %1964 = vmatpush1.bf16.msra.mxu0 %v1516
    %1965 = vmatprep.subr.bf16.mxu0 %v1521
    %1966 = vmatpush1.bf16.msra.mxu0 %v1520
    %1967 = vmatprep.subr.bf16.mxu0 %v1525
    %1968 = vmatpush1.bf16.msra.mxu0 %v1524
    %1969 = vmatprep.subr.bf16.mxu0 %v1529
    %1970 = vmatpush1.bf16.msra.mxu0 %v1528
    %1971 = vmatprep.subr.bf16.mxu0 %v1533
    %1972 = vmatpush1.bf16.msra.mxu0 %v1532
    %1973 = vmatprep.subr.bf16.mxu0 %v1537
    %1974 = vmatpush1.bf16.msra.mxu0 %v1536
    %1975 = vmatprep.subr.bf16.mxu0 %v1541
    %1976 = vmatpush1.bf16.msra.mxu0 %v1540
    %1977 = vmatprep.subr.bf16.mxu0 %v1545
    %1978 = vmatpush1.bf16.msra.mxu0 %v1544
    %1979 = vmatprep.subr.bf16.mxu0 %v1549
    %1980 = vmatpush1.bf16.msra.mxu0 %v1548
    %1981 = vmatprep.subr.bf16.mxu0 %v1553
    %1982 = vmatpush1.bf16.msra.mxu0 %v1552
    %1983 = vmatprep.subr.bf16.mxu0 %v1557
    %1984 = vmatpush1.bf16.msra.mxu0 %v1556
    %1985 = vmatprep.subr.bf16.mxu0 %v1561
    %1986 = vmatpush1.bf16.msra.mxu0 %v1560
    %1987 = vmatprep.subr.bf16.mxu0 %v1565
    %1988 = vmatpush1.bf16.msra.mxu0 %v1564
    %1989 = vmatprep.subr.bf16.mxu0 %v1569
    %1990 = vmatpush1.bf16.msra.mxu0 %v1568
    %1991 = vmatprep.subr.bf16.mxu0 %v1573
    %1992 = vmatpush1.bf16.msra.mxu0 %v1572
    %1993 = vmatprep.mubr.bf16.mxu0 %v273
    %1994 = vmatmul.mubr.bf16.gmra.mrb[0].mxu0 %v272
    %v1995 = vpop.f32.mrb[0].mxu0
    %v1996 = vadd.f32 %v1953, %v1995
    %v1997 = vpop.f32.mrb[0].mxu0
    %v1998 = vadd.f32 %v1955, %v1997
    %v1999 = vpop.f32.mrb[0].mxu0
    %v2000 = vadd.f32 %v1957, %v1999
    %v2001 = vpop.f32.mrb[0].mxu0
    %v2002 = vadd.f32 %v1959, %v2001
    %2003 = vdwg.mxu0
    %2004 = vmatprep.subr.bf16.mxu0 %v1323
    %2005 = vmatpush1.bf16.msra.mxu0 %v1322
    %2006 = vmatprep.subr.bf16.mxu0 %v1327
    %2007 = vmatpush1.bf16.msra.mxu0 %v1326
    %2008 = vmatprep.subr.bf16.mxu0 %v1331
    %2009 = vmatpush1.bf16.msra.mxu0 %v1330
    %2010 = vmatprep.subr.bf16.mxu0 %v1335
    %2011 = vmatpush1.bf16.msra.mxu0 %v1334
    %2012 = vmatprep.subr.bf16.mxu0 %v1339
    %2013 = vmatpush1.bf16.msra.mxu0 %v1338
    %2014 = vmatprep.subr.bf16.mxu0 %v1343
    %2015 = vmatpush1.bf16.msra.mxu0 %v1342
    %2016 = vmatprep.subr.bf16.mxu0 %v1347
    %2017 = vmatpush1.bf16.msra.mxu0 %v1346
    %2018 = vmatprep.subr.bf16.mxu0 %v1351
    %2019 = vmatpush1.bf16.msra.mxu0 %v1350
    %2020 = vmatprep.subr.bf16.mxu0 %v1355
    %2021 = vmatpush1.bf16.msra.mxu0 %v1354
    %2022 = vmatprep.subr.bf16.mxu0 %v1359
    %2023 = vmatpush1.bf16.msra.mxu0 %v1358
    %2024 = vmatprep.subr.bf16.mxu0 %v1363
    %2025 = vmatpush1.bf16.msra.mxu0 %v1362
    %2026 = vmatprep.subr.bf16.mxu0 %v1367
    %2027 = vmatpush1.bf16.msra.mxu0 %v1366
    %2028 = vmatprep.subr.bf16.mxu0 %v1371
    %2029 = vmatpush1.bf16.msra.mxu0 %v1370
    %2030 = vmatprep.subr.bf16.mxu0 %v1375
    %2031 = vmatpush1.bf16.msra.mxu0 %v1374
    %2032 = vmatprep.subr.bf16.mxu0 %v1379
    %2033 = vmatpush1.bf16.msra.mxu0 %v1378
    %2034 = vmatprep.subr.bf16.mxu0 %v1383
    %2035 = vmatpush1.bf16.msra.mxu0 %v1382
    %2036 = vmatprep.mubr.bf16.mxu0 %v267
    %2037 = vmatmul.mubr.bf16.gmra.mrb[0].mxu0 %v266
    %v2038 = vpop.f32.mrb[0].mxu0
    %v2039 = vadd.f32 %v543, %v2038
    %v2040 = vpop.f32.mrb[0].mxu0
    %v2041 = vadd.f32 %v547, %v2040
    %v2042 = vpop.f32.mrb[0].mxu0
    %v2043 = vadd.f32 %v543, %v2042
    %v2044 = vpop.f32.mrb[0].mxu0
    %v2045 = vadd.f32 %v547, %v2044
    %2046 = vdwg.mxu0
    %2047 = vmatprep.subr.bf16.mxu0 %v1387
    %2048 = vmatpush1.bf16.msra.mxu0 %v1386
    %2049 = vmatprep.subr.bf16.mxu0 %v1391
    %2050 = vmatpush1.bf16.msra.mxu0 %v1390
    %2051 = vmatprep.subr.bf16.mxu0 %v1395
    %2052 = vmatpush1.bf16.msra.mxu0 %v1394
    %2053 = vmatprep.subr.bf16.mxu0 %v1399
    %2054 = vmatpush1.bf16.msra.mxu0 %v1398
    %2055 = vmatprep.subr.bf16.mxu0 %v1403
    %2056 = vmatpush1.bf16.msra.mxu0 %v1402
    %2057 = vmatprep.subr.bf16.mxu0 %v1407
    %2058 = vmatpush1.bf16.msra.mxu0 %v1406
    %2059 = vmatprep.subr.bf16.mxu0 %v1411
    %2060 = vmatpush1.bf16.msra.mxu0 %v1410
    %2061 = vmatprep.subr.bf16.mxu0 %v1415
    %2062 = vmatpush1.bf16.msra.mxu0 %v1414
    %2063 = vmatprep.subr.bf16.mxu0 %v1419
    %2064 = vmatpush1.bf16.msra.mxu0 %v1418
    %2065 = vmatprep.subr.bf16.mxu0 %v1423
    %2066 = vmatpush1.bf16.msra.mxu0 %v1422
    %2067 = vmatprep.subr.bf16.mxu0 %v1427
    %2068 = vmatpush1.bf16.msra.mxu0 %v1426
    %2069 = vmatprep.subr.bf16.mxu0 %v1431
    %2070 = vmatpush1.bf16.msra.mxu0 %v1430
    %2071 = vmatprep.subr.bf16.mxu0 %v1435
    %2072 = vmatpush1.bf16.msra.mxu0 %v1434
    %2073 = vmatprep.subr.bf16.mxu0 %v1439
    %2074 = vmatpush1.bf16.msra.mxu0 %v1438
    %2075 = vmatprep.subr.bf16.mxu0 %v1443
    %2076 = vmatpush1.bf16.msra.mxu0 %v1442
    %2077 = vmatprep.subr.bf16.mxu0 %v1447
    %2078 = vmatpush1.bf16.msra.mxu0 %v1446
    %2079 = vmatprep.mubr.bf16.mxu0 %v269
    %2080 = vmatmul.mubr.bf16.gmra.mrb[0].mxu0 %v268
    %v2081 = vpop.f32.mrb[0].mxu0
    %v2082 = vadd.f32 %v2039, %v2081
    %v2083 = vpop.f32.mrb[0].mxu0
    %v2084 = vadd.f32 %v2041, %v2083
    %v2085 = vpop.f32.mrb[0].mxu0
    %v2086 = vadd.f32 %v2043, %v2085
    %v2087 = vpop.f32.mrb[0].mxu0
    %v2088 = vadd.f32 %v2045, %v2087
    %2089 = vdwg.mxu0
    %2090 = vmatprep.subr.bf16.mxu0 %v1451
    %2091 = vmatpush1.bf16.msra.mxu0 %v1450
    %2092 = vmatprep.subr.bf16.mxu0 %v1455
    %2093 = vmatpush1.bf16.msra.mxu0 %v1454
    %2094 = vmatprep.subr.bf16.mxu0 %v1459
    %2095 = vmatpush1.bf16.msra.mxu0 %v1458
    %2096 = vmatprep.subr.bf16.mxu0 %v1463
    %2097 = vmatpush1.bf16.msra.mxu0 %v1462
    %2098 = vmatprep.subr.bf16.mxu0 %v1467
    %2099 = vmatpush1.bf16.msra.mxu0 %v1466
    %2100 = vmatprep.subr.bf16.mxu0 %v1471
    %2101 = vmatpush1.bf16.msra.mxu0 %v1470
    %2102 = vmatprep.subr.bf16.mxu0 %v1475
    %2103 = vmatpush1.bf16.msra.mxu0 %v1474
    %2104 = vmatprep.subr.bf16.mxu0 %v1479
    %2105 = vmatpush1.bf16.msra.mxu0 %v1478
    %2106 = vmatprep.subr.bf16.mxu0 %v1483
    %2107 = vmatpush1.bf16.msra.mxu0 %v1482
    %2108 = vmatprep.subr.bf16.mxu0 %v1487
    %2109 = vmatpush1.bf16.msra.mxu0 %v1486
    %2110 = vmatprep.subr.bf16.mxu0 %v1491
    %2111 = vmatpush1.bf16.msra.mxu0 %v1490
    %2112 = vmatprep.subr.bf16.mxu0 %v1495
    %2113 = vmatpush1.bf16.msra.mxu0 %v1494
    %2114 = vmatprep.subr.bf16.mxu0 %v1499
    %2115 = vmatpush1.bf16.msra.mxu0 %v1498
    %2116 = vmatprep.subr.bf16.mxu0 %v1503
    %2117 = vmatpush1.bf16.msra.mxu0 %v1502
    %2118 = vmatprep.subr.bf16.mxu0 %v1507
    %2119 = vmatpush1.bf16.msra.mxu0 %v1506
    %2120 = vmatprep.subr.bf16.mxu0 %v1511
    %2121 = vmatpush1.bf16.msra.mxu0 %v1510
    %2122 = vmatprep.mubr.bf16.mxu0 %v271
    %2123 = vmatmul.mubr.bf16.gmra.mrb[0].mxu0 %v270
    %v2124 = vpop.f32.mrb[0].mxu0
    %v2125 = vadd.f32 %v2082, %v2124
    %v2126 = vpop.f32.mrb[0].mxu0
    %v2127 = vadd.f32 %v2084, %v2126
    %v2128 = vpop.f32.mrb[0].mxu0
    %v2129 = vadd.f32 %v2086, %v2128
    %v2130 = vpop.f32.mrb[0].mxu0
    %v2131 = vadd.f32 %v2088, %v2130
    %2132 = vdwg.mxu0
    %2133 = vmatprep.subr.bf16.mxu0 %v1515
    %2134 = vmatpush1.bf16.msra.mxu0 %v1514
    %2135 = vmatprep.subr.bf16.mxu0 %v1519
    %2136 = vmatpush1.bf16.msra.mxu0 %v1518
    %2137 = vmatprep.subr.bf16.mxu0 %v1523
    %2138 = vmatpush1.bf16.msra.mxu0 %v1522
    %2139 = vmatprep.subr.bf16.mxu0 %v1527
    %2140 = vmatpush1.bf16.msra.mxu0 %v1526
    %2141 = vmatprep.subr.bf16.mxu0 %v1531
    %2142 = vmatpush1.bf16.msra.mxu0 %v1530
    %2143 = vmatprep.subr.bf16.mxu0 %v1535
    %2144 = vmatpush1.bf16.msra.mxu0 %v1534
    %2145 = vmatprep.subr.bf16.mxu0 %v1539
    %2146 = vmatpush1.bf16.msra.mxu0 %v1538
    %2147 = vmatprep.subr.bf16.mxu0 %v1543
    %2148 = vmatpush1.bf16.msra.mxu0 %v1542
    %2149 = vmatprep.subr.bf16.mxu0 %v1547
    %2150 = vmatpush1.bf16.msra.mxu0 %v1546
    %2151 = vmatprep.subr.bf16.mxu0 %v1551
    %2152 = vmatpush1.bf16.msra.mxu0 %v1550
    %2153 = vmatprep.subr.bf16.mxu0 %v1555
    %2154 = vmatpush1.bf16.msra.mxu0 %v1554
    %2155 = vmatprep.subr.bf16.mxu0 %v1559
    %2156 = vmatpush1.bf16.msra.mxu0 %v1558
    %2157 = vmatprep.subr.bf16.mxu0 %v1563
    %2158 = vmatpush1.bf16.msra.mxu0 %v1562
    %2159 = vmatprep.subr.bf16.mxu0 %v1567
    %2160 = vmatpush1.bf16.msra.mxu0 %v1566
    %2161 = vmatprep.subr.bf16.mxu0 %v1571
    %2162 = vmatpush1.bf16.msra.mxu0 %v1570
    %2163 = vmatprep.subr.bf16.mxu0 %v1575
    %2164 = vmatpush1.bf16.msra.mxu0 %v1574
    %2165 = vmatprep.mubr.bf16.mxu0 %v273
    %2166 = vmatmul.mubr.bf16.gmra.mrb[0].mxu0 %v272
    %v2167 = vpop.f32.mrb[0].mxu0
    %v2168 = vadd.f32 %v2125, %v2167
    %v2169 = vpop.f32.mrb[0].mxu0
    %v2170 = vadd.f32 %v2127, %v2169
    %v2171 = vpop.f32.mrb[0].mxu0
    %v2172 = vadd.f32 %v2129, %v2171
    %v2173 = vpop.f32.mrb[0].mxu0
    %v2174 = vadd.f32 %v2131, %v2173
    %2175 = vdwg.mxu0
    %v2176 = vmax.f32 %v1996, 0.0
    %v2177 = vmax.f32 %v1998, 0.0
    %v2178 = vmax.f32 %v2168, 0.0
    %v2179 = vmax.f32 %v2170, 0.0
    %v2180 = vmax.f32 %v2000, 0.0
    %v2181 = vmax.f32 %v2002, 0.0
    %v2182 = vmax.f32 %v2172, 0.0
    %v2183 = vmax.f32 %v2174, 0.0
    %v2184 = vpack.c.bf16 %v2180, %v2176
    %v2185 = vpack.c.bf16 %v2181, %v2177
    %v2186 = vpack.c.bf16 %v2182, %v2178
    %v2187 = vpack.c.bf16 %v2183, %v2179
    %v2188 = vld [vmem:[#allocation4] sm:$0xff]
    %v2189 = vld [vmem:[#allocation4 + $0x8] sm:$0xff]
    %v2190 = vld [vmem:[#allocation4 + $0x10] sm:$0xff]
    %v2191 = vld [vmem:[#allocation4 + $0x18] sm:$0xff]
    %v2192 = vld [vmem:[#allocation4 + $0x20] sm:$0xff]
    %v2193 = vld [vmem:[#allocation4 + $0x28] sm:$0xff]
    %v2194 = vld [vmem:[#allocation4 + $0x30] sm:$0xff]
    %v2195 = vld [vmem:[#allocation4 + $0x38] sm:$0xff]
    %v2196 = vld [vmem:[#allocation4 + $0x40] sm:$0xff]
    %v2197 = vld [vmem:[#allocation4 + $0x48] sm:$0xff]
    %v2198 = vld [vmem:[#allocation4 + $0x50] sm:$0xff]
    %v2199 = vld [vmem:[#allocation4 + $0x58] sm:$0xff]
    %v2200 = vld [vmem:[#allocation4 + $0x60] sm:$0xff]
    %v2201 = vld [vmem:[#allocation4 + $0x68] sm:$0xff]
    %v2202 = vld [vmem:[#allocation4 + $0x70] sm:$0xff]
    %v2203 = vld [vmem:[#allocation4 + $0x78] sm:$0xff]
    %v2204 = vld [vmem:[#allocation4 + $0x80] sm:$0xff]
    %v2205 = vld [vmem:[#allocation4 + $0x88] sm:$0xff]
    %v2206 = vld [vmem:[#allocation4 + $0x90] sm:$0xff]
    %v2207 = vld [vmem:[#allocation4 + $0x98] sm:$0xff]
    %v2208 = vld [vmem:[#allocation4 + $0xa0] sm:$0xff]
    %v2209 = vld [vmem:[#allocation4 + $0xa8] sm:$0xff]
    %v2210 = vld [vmem:[#allocation4 + $0xb0] sm:$0xff]
    %v2211 = vld [vmem:[#allocation4 + $0xb8] sm:$0xff]
    %v2212 = vld [vmem:[#allocation4 + $0xc0] sm:$0xff]
    %v2213 = vld [vmem:[#allocation4 + $0xc8] sm:$0xff]
    %v2214 = vld [vmem:[#allocation4 + $0xd0] sm:$0xff]
    %v2215 = vld [vmem:[#allocation4 + $0xd8] sm:$0xff]
    %v2216 = vld [vmem:[#allocation4 + $0xe0] sm:$0xff]
    %v2217 = vld [vmem:[#allocation4 + $0xe8] sm:$0xff]
    %v2218 = vld [vmem:[#allocation4 + $0xf0] sm:$0xff]
    %v2219 = vld [vmem:[#allocation4 + $0xf8] sm:$0xff]
    %v2220 = vld [vmem:[#allocation4 + $0x100] sm:$0xff]
    %v2221 = vld [vmem:[#allocation4 + $0x108] sm:$0xff]
    %v2222 = vld [vmem:[#allocation4 + $0x110] sm:$0xff]
    %v2223 = vld [vmem:[#allocation4 + $0x118] sm:$0xff]
    %v2224 = vld [vmem:[#allocation4 + $0x120] sm:$0xff]
    %v2225 = vld [vmem:[#allocation4 + $0x128] sm:$0xff]
    %v2226 = vld [vmem:[#allocation4 + $0x130] sm:$0xff]
    %v2227 = vld [vmem:[#allocation4 + $0x138] sm:$0xff]
    %v2228 = vld [vmem:[#allocation4 + $0x140] sm:$0xff]
    %v2229 = vld [vmem:[#allocation4 + $0x148] sm:$0xff]
    %v2230 = vld [vmem:[#allocation4 + $0x150] sm:$0xff]
    %v2231 = vld [vmem:[#allocation4 + $0x158] sm:$0xff]
    %v2232 = vld [vmem:[#allocation4 + $0x160] sm:$0xff]
    %v2233 = vld [vmem:[#allocation4 + $0x168] sm:$0xff]
    %v2234 = vld [vmem:[#allocation4 + $0x170] sm:$0xff]
    %v2235 = vld [vmem:[#allocation4 + $0x178] sm:$0xff]
    %v2236 = vld [vmem:[#allocation4 + $0x180] sm:$0xff]
    %v2237 = vld [vmem:[#allocation4 + $0x188] sm:$0xff]
    %v2238 = vld [vmem:[#allocation4 + $0x190] sm:$0xff]
    %v2239 = vld [vmem:[#allocation4 + $0x198] sm:$0xff]
    %v2240 = vld [vmem:[#allocation4 + $0x1a0] sm:$0xff]
    %v2241 = vld [vmem:[#allocation4 + $0x1a8] sm:$0xff]
    %v2242 = vld [vmem:[#allocation4 + $0x1b0] sm:$0xff]
    %v2243 = vld [vmem:[#allocation4 + $0x1b8] sm:$0xff]
    %v2244 = vld [vmem:[#allocation4 + $0x1c0] sm:$0xff]
    %v2245 = vld [vmem:[#allocation4 + $0x1c8] sm:$0xff]
    %v2246 = vld [vmem:[#allocation4 + $0x1d0] sm:$0xff]
    %v2247 = vld [vmem:[#allocation4 + $0x1d8] sm:$0xff]
    %v2248 = vld [vmem:[#allocation4 + $0x1e0] sm:$0xff]
    %v2249 = vld [vmem:[#allocation4 + $0x1e8] sm:$0xff]
    %v2250 = vld [vmem:[#allocation4 + $0x1f0] sm:$0xff]
    %v2251 = vld [vmem:[#allocation4 + $0x1f8] sm:$0xff]
    %v2252 = vld [vmem:[%s4] sm:$0x3]
    %v2254 = vlaneseq
    %v2255 = vshrl.u32 %v2254, 7
    %v2256 = vsub.s32 0, %v2255
    %v2257 = vrot.slane %v2252, %v2256
    %v2258 = vlaneseq
    %v2259 = vshrl.u32 %v2258, 7
    %v2260 = vsub.s32 1, %v2259
    %v2261 = vrot.slane %v2252, %v2260
    %v2328 = vunpack.c.l.b16 %v2188
    %v2329 = vunpack.c.h.b16 %v2188
    %v2330 = vunpack.c.l.b16 %v2189
    %v2331 = vunpack.c.h.b16 %v2189
    %v2332 = vunpack.c.l.b16 %v2190
    %v2333 = vunpack.c.h.b16 %v2190
    %v2334 = vunpack.c.l.b16 %v2191
    %v2335 = vunpack.c.h.b16 %v2191
    %v2336 = vunpack.c.l.b16 %v2192
    %v2337 = vunpack.c.h.b16 %v2192
    %v2338 = vunpack.c.l.b16 %v2193
    %v2339 = vunpack.c.h.b16 %v2193
    %v2340 = vunpack.c.l.b16 %v2194
    %v2341 = vunpack.c.h.b16 %v2194
    %v2342 = vunpack.c.l.b16 %v2195
    %v2343 = vunpack.c.h.b16 %v2195
    %v2344 = vunpack.c.l.b16 %v2196
    %v2345 = vunpack.c.h.b16 %v2196
    %v2346 = vunpack.c.l.b16 %v2197
    %v2347 = vunpack.c.h.b16 %v2197
    %v2348 = vunpack.c.l.b16 %v2198
    %v2349 = vunpack.c.h.b16 %v2198
    %v2350 = vunpack.c.l.b16 %v2199
    %v2351 = vunpack.c.h.b16 %v2199
    %v2352 = vunpack.c.l.b16 %v2200
    %v2353 = vunpack.c.h.b16 %v2200
    %v2354 = vunpack.c.l.b16 %v2201
    %v2355 = vunpack.c.h.b16 %v2201
    %v2356 = vunpack.c.l.b16 %v2202
    %v2357 = vunpack.c.h.b16 %v2202
    %v2358 = vunpack.c.l.b16 %v2203
    %v2359 = vunpack.c.h.b16 %v2203
    %v2360 = vunpack.c.l.b16 %v2204
    %v2361 = vunpack.c.h.b16 %v2204
    %v2362 = vunpack.c.l.b16 %v2205
    %v2363 = vunpack.c.h.b16 %v2205
    %v2364 = vunpack.c.l.b16 %v2206
    %v2365 = vunpack.c.h.b16 %v2206
    %v2366 = vunpack.c.l.b16 %v2207
    %v2367 = vunpack.c.h.b16 %v2207
    %v2368 = vunpack.c.l.b16 %v2208
    %v2369 = vunpack.c.h.b16 %v2208
    %v2370 = vunpack.c.l.b16 %v2209
    %v2371 = vunpack.c.h.b16 %v2209
    %v2372 = vunpack.c.l.b16 %v2210
    %v2373 = vunpack.c.h.b16 %v2210
    %v2374 = vunpack.c.l.b16 %v2211
    %v2375 = vunpack.c.h.b16 %v2211
    %v2376 = vunpack.c.l.b16 %v2212
    %v2377 = vunpack.c.h.b16 %v2212
    %v2378 = vunpack.c.l.b16 %v2213
    %v2379 = vunpack.c.h.b16 %v2213
    %v2380 = vunpack.c.l.b16 %v2214
    %v2381 = vunpack.c.h.b16 %v2214
    %v2382 = vunpack.c.l.b16 %v2215
    %v2383 = vunpack.c.h.b16 %v2215
    %v2384 = vunpack.c.l.b16 %v2216
    %v2385 = vunpack.c.h.b16 %v2216
    %v2386 = vunpack.c.l.b16 %v2217
    %v2387 = vunpack.c.h.b16 %v2217
    %v2388 = vunpack.c.l.b16 %v2218
    %v2389 = vunpack.c.h.b16 %v2218
    %v2390 = vunpack.c.l.b16 %v2219
    %v2391 = vunpack.c.h.b16 %v2219
    %v2392 = vunpack.c.l.b16 %v2220
    %v2393 = vunpack.c.h.b16 %v2220
    %v2394 = vunpack.c.l.b16 %v2221
    %v2395 = vunpack.c.h.b16 %v2221
    %v2396 = vunpack.c.l.b16 %v2222
    %v2397 = vunpack.c.h.b16 %v2222
    %v2398 = vunpack.c.l.b16 %v2223
    %v2399 = vunpack.c.h.b16 %v2223
    %v2400 = vunpack.c.l.b16 %v2224
    %v2401 = vunpack.c.h.b16 %v2224
    %v2402 = vunpack.c.l.b16 %v2225
    %v2403 = vunpack.c.h.b16 %v2225
    %v2404 = vunpack.c.l.b16 %v2226
    %v2405 = vunpack.c.h.b16 %v2226
    %v2406 = vunpack.c.l.b16 %v2227
    %v2407 = vunpack.c.h.b16 %v2227
    %v2408 = vunpack.c.l.b16 %v2228
    %v2409 = vunpack.c.h.b16 %v2228
    %v2410 = vunpack.c.l.b16 %v2229
    %v2411 = vunpack.c.h.b16 %v2229
    %v2412 = vunpack.c.l.b16 %v2230
    %v2413 = vunpack.c.h.b16 %v2230
    %v2414 = vunpack.c.l.b16 %v2231
    %v2415 = vunpack.c.h.b16 %v2231
    %v2416 = vunpack.c.l.b16 %v2232
    %v2417 = vunpack.c.h.b16 %v2232
    %v2418 = vunpack.c.l.b16 %v2233
    %v2419 = vunpack.c.h.b16 %v2233
    %v2420 = vunpack.c.l.b16 %v2234
    %v2421 = vunpack.c.h.b16 %v2234
    %v2422 = vunpack.c.l.b16 %v2235
    %v2423 = vunpack.c.h.b16 %v2235
    %v2424 = vunpack.c.l.b16 %v2236
    %v2425 = vunpack.c.h.b16 %v2236
    %v2426 = vunpack.c.l.b16 %v2237
    %v2427 = vunpack.c.h.b16 %v2237
    %v2428 = vunpack.c.l.b16 %v2238
    %v2429 = vunpack.c.h.b16 %v2238
    %v2430 = vunpack.c.l.b16 %v2239
    %v2431 = vunpack.c.h.b16 %v2239
    %v2432 = vunpack.c.l.b16 %v2240
    %v2433 = vunpack.c.h.b16 %v2240
    %v2434 = vunpack.c.l.b16 %v2241
    %v2435 = vunpack.c.h.b16 %v2241
    %v2436 = vunpack.c.l.b16 %v2242
    %v2437 = vunpack.c.h.b16 %v2242
    %v2438 = vunpack.c.l.b16 %v2243
    %v2439 = vunpack.c.h.b16 %v2243
    %v2440 = vunpack.c.l.b16 %v2244
    %v2441 = vunpack.c.h.b16 %v2244
    %v2442 = vunpack.c.l.b16 %v2245
    %v2443 = vunpack.c.h.b16 %v2245
    %v2444 = vunpack.c.l.b16 %v2246
    %v2445 = vunpack.c.h.b16 %v2246
    %v2446 = vunpack.c.l.b16 %v2247
    %v2447 = vunpack.c.h.b16 %v2247
    %v2448 = vunpack.c.l.b16 %v2248
    %v2449 = vunpack.c.h.b16 %v2248
    %v2450 = vunpack.c.l.b16 %v2249
    %v2451 = vunpack.c.h.b16 %v2249
    %v2452 = vunpack.c.l.b16 %v2250
    %v2453 = vunpack.c.h.b16 %v2250
    %v2454 = vunpack.c.l.b16 %v2251
    %v2455 = vunpack.c.h.b16 %v2251
    %v2456 = vpack.c.b16 %v2330, %v2328
    %v2457 = vpack.c.b16 %v2331, %v2329
    %v2458 = vpack.c.b16 %v2334, %v2332
    %v2459 = vpack.c.b16 %v2335, %v2333
    %v2460 = vpack.c.b16 %v2338, %v2336
    %v2461 = vpack.c.b16 %v2339, %v2337
    %v2462 = vpack.c.b16 %v2342, %v2340
    %v2463 = vpack.c.b16 %v2343, %v2341
    %v2464 = vpack.c.b16 %v2346, %v2344
    %v2465 = vpack.c.b16 %v2347, %v2345
    %v2466 = vpack.c.b16 %v2350, %v2348
    %v2467 = vpack.c.b16 %v2351, %v2349
    %v2468 = vpack.c.b16 %v2354, %v2352
    %v2469 = vpack.c.b16 %v2355, %v2353
    %v2470 = vpack.c.b16 %v2358, %v2356
    %v2471 = vpack.c.b16 %v2359, %v2357
    %v2472 = vpack.c.b16 %v2362, %v2360
    %v2473 = vpack.c.b16 %v2363, %v2361
    %v2474 = vpack.c.b16 %v2366, %v2364
    %v2475 = vpack.c.b16 %v2367, %v2365
    %v2476 = vpack.c.b16 %v2370, %v2368
    %v2477 = vpack.c.b16 %v2371, %v2369
    %v2478 = vpack.c.b16 %v2374, %v2372
    %v2479 = vpack.c.b16 %v2375, %v2373
    %v2480 = vpack.c.b16 %v2378, %v2376
    %v2481 = vpack.c.b16 %v2379, %v2377
    %v2482 = vpack.c.b16 %v2382, %v2380
    %v2483 = vpack.c.b16 %v2383, %v2381
    %v2484 = vpack.c.b16 %v2386, %v2384
    %v2485 = vpack.c.b16 %v2387, %v2385
    %v2486 = vpack.c.b16 %v2390, %v2388
    %v2487 = vpack.c.b16 %v2391, %v2389
    %v2488 = vpack.c.b16 %v2394, %v2392
    %v2489 = vpack.c.b16 %v2395, %v2393
    %v2490 = vpack.c.b16 %v2398, %v2396
    %v2491 = vpack.c.b16 %v2399, %v2397
    %v2492 = vpack.c.b16 %v2402, %v2400
    %v2493 = vpack.c.b16 %v2403, %v2401
    %v2494 = vpack.c.b16 %v2406, %v2404
    %v2495 = vpack.c.b16 %v2407, %v2405
    %v2496 = vpack.c.b16 %v2410, %v2408
    %v2497 = vpack.c.b16 %v2411, %v2409
    %v2498 = vpack.c.b16 %v2414, %v2412
    %v2499 = vpack.c.b16 %v2415, %v2413
    %v2500 = vpack.c.b16 %v2418, %v2416
    %v2501 = vpack.c.b16 %v2419, %v2417
    %v2502 = vpack.c.b16 %v2422, %v2420
    %v2503 = vpack.c.b16 %v2423, %v2421
    %v2504 = vpack.c.b16 %v2426, %v2424
    %v2505 = vpack.c.b16 %v2427, %v2425
    %v2506 = vpack.c.b16 %v2430, %v2428
    %v2507 = vpack.c.b16 %v2431, %v2429
    %v2508 = vpack.c.b16 %v2434, %v2432
    %v2509 = vpack.c.b16 %v2435, %v2433
    %v2510 = vpack.c.b16 %v2438, %v2436
    %v2511 = vpack.c.b16 %v2439, %v2437
    %v2512 = vpack.c.b16 %v2442, %v2440
    %v2513 = vpack.c.b16 %v2443, %v2441
    %v2514 = vpack.c.b16 %v2446, %v2444
    %v2515 = vpack.c.b16 %v2447, %v2445
    %v2516 = vpack.c.b16 %v2450, %v2448
    %v2517 = vpack.c.b16 %v2451, %v2449
    %v2518 = vpack.c.b16 %v2454, %v2452
    %v2519 = vpack.c.b16 %v2455, %v2453
    %2584 = vmatprep.subr.bf16.mxu0 %v2457
    %2585 = vmatpush1.bf16.msra.mxu0 %v2456
    %2586 = vmatprep.subr.bf16.mxu0 %v2459
    %2587 = vmatpush1.bf16.msra.mxu0 %v2458
    %2588 = vmatprep.subr.bf16.mxu0 %v2461
    %2589 = vmatpush1.bf16.msra.mxu0 %v2460
    %2590 = vmatprep.subr.bf16.mxu0 %v2463
    %2591 = vmatpush1.bf16.msra.mxu0 %v2462
    %2592 = vmatprep.subr.bf16.mxu0 %v2465
    %2593 = vmatpush1.bf16.msra.mxu0 %v2464
    %2594 = vmatprep.subr.bf16.mxu0 %v2467
    %2595 = vmatpush1.bf16.msra.mxu0 %v2466
    %2596 = vmatprep.subr.bf16.mxu0 %v2469
    %2597 = vmatpush1.bf16.msra.mxu0 %v2468
    %2598 = vmatprep.subr.bf16.mxu0 %v2471
    %2599 = vmatpush1.bf16.msra.mxu0 %v2470
    %2600 = vmatprep.subr.bf16.mxu0 %v2473
    %2601 = vmatpush1.bf16.msra.mxu0 %v2472
    %2602 = vmatprep.subr.bf16.mxu0 %v2475
    %2603 = vmatpush1.bf16.msra.mxu0 %v2474
    %2604 = vmatprep.subr.bf16.mxu0 %v2477
    %2605 = vmatpush1.bf16.msra.mxu0 %v2476
    %2606 = vmatprep.subr.bf16.mxu0 %v2479
    %2607 = vmatpush1.bf16.msra.mxu0 %v2478
    %2608 = vmatprep.subr.bf16.mxu0 %v2481
    %2609 = vmatpush1.bf16.msra.mxu0 %v2480
    %2610 = vmatprep.subr.bf16.mxu0 %v2483
    %2611 = vmatpush1.bf16.msra.mxu0 %v2482
    %2612 = vmatprep.subr.bf16.mxu0 %v2485
    %2613 = vmatpush1.bf16.msra.mxu0 %v2484
    %2614 = vmatprep.subr.bf16.mxu0 %v2487
    %2615 = vmatpush1.bf16.msra.mxu0 %v2486
    %2616 = vmatprep.mubr.bf16.mxu0 %v2185
    %2617 = vmatmul.mubr.bf16.gmra.mrb[0].mxu0 %v2184
    %v2618 = vpop.f32.mrb[0].mxu0
    %v2619 = vadd.f32 %v2257, %v2618
    %v2620 = vpop.f32.mrb[0].mxu0
    %v2621 = vadd.f32 %v2261, %v2620
    %v2622 = vpop.f32.mrb[0].mxu0
    %v2623 = vadd.f32 %v2257, %v2622
    %v2624 = vpop.f32.mrb[0].mxu0
    %v2625 = vadd.f32 %v2261, %v2624
    %2626 = vdwg.mxu0
    %2627 = vmatprep.subr.bf16.mxu0 %v2489
    %2628 = vmatpush1.bf16.msra.mxu0 %v2488
    %2629 = vmatprep.subr.bf16.mxu0 %v2491
    %2630 = vmatpush1.bf16.msra.mxu0 %v2490
    %2631 = vmatprep.subr.bf16.mxu0 %v2493
    %2632 = vmatpush1.bf16.msra.mxu0 %v2492
    %2633 = vmatprep.subr.bf16.mxu0 %v2495
    %2634 = vmatpush1.bf16.msra.mxu0 %v2494
    %2635 = vmatprep.subr.bf16.mxu0 %v2497
    %2636 = vmatpush1.bf16.msra.mxu0 %v2496
    %2637 = vmatprep.subr.bf16.mxu0 %v2499
    %2638 = vmatpush1.bf16.msra.mxu0 %v2498
    %2639 = vmatprep.subr.bf16.mxu0 %v2501
    %2640 = vmatpush1.bf16.msra.mxu0 %v2500
    %2641 = vmatprep.subr.bf16.mxu0 %v2503
    %2642 = vmatpush1.bf16.msra.mxu0 %v2502
    %2643 = vmatprep.subr.bf16.mxu0 %v2505
    %2644 = vmatpush1.bf16.msra.mxu0 %v2504
    %2645 = vmatprep.subr.bf16.mxu0 %v2507
    %2646 = vmatpush1.bf16.msra.mxu0 %v2506
    %2647 = vmatprep.subr.bf16.mxu0 %v2509
    %2648 = vmatpush1.bf16.msra.mxu0 %v2508
    %2649 = vmatprep.subr.bf16.mxu0 %v2511
    %2650 = vmatpush1.bf16.msra.mxu0 %v2510
    %2651 = vmatprep.subr.bf16.mxu0 %v2513
    %2652 = vmatpush1.bf16.msra.mxu0 %v2512
    %2653 = vmatprep.subr.bf16.mxu0 %v2515
    %2654 = vmatpush1.bf16.msra.mxu0 %v2514
    %2655 = vmatprep.subr.bf16.mxu0 %v2517
    %2656 = vmatpush1.bf16.msra.mxu0 %v2516
    %2657 = vmatprep.subr.bf16.mxu0 %v2519
    %2658 = vmatpush1.bf16.msra.mxu0 %v2518
    %2659 = vmatprep.mubr.bf16.mxu0 %v2187
    %2660 = vmatmul.mubr.bf16.gmra.mrb[0].mxu0 %v2186
    %v2661 = vpop.f32.mrb[0].mxu0
    %v2662 = vadd.f32 %v2619, %v2661
    %v2663 = vpop.f32.mrb[0].mxu0
    %v2664 = vadd.f32 %v2621, %v2663
    %v2665 = vpop.f32.mrb[0].mxu0
    %v2666 = vadd.f32 %v2623, %v2665
    %v2667 = vpop.f32.mrb[0].mxu0
    %v2668 = vadd.f32 %v2625, %v2667
    %2669 = vdwg.mxu0
    %v2670 = vmax.f32 %v2662, 0.0
    %v2671 = vmax.f32 %v2664, 0.0
    %v2672 = vmax.f32 %v2666, 0.0
    %v2673 = vmax.f32 %v2668, 0.0
    %v2674 = vpack.c.bf16 %v2672, %v2670
    %v2675 = vpack.c.bf16 %v2673, %v2671
    %v2676 = vld [vmem:[%s5] sm:$0xf]
    %v2677 = vld [vmem:[%s5 + $0x4] sm:$0xf]
    %v2678 = vld [vmem:[%s5 + $0x8] sm:$0xf]
    %v2679 = vld [vmem:[%s5 + $0xc] sm:$0xf]
    %v2680 = vld [vmem:[%s5 + $0x10] sm:$0xf]
    %v2681 = vld [vmem:[%s5 + $0x14] sm:$0xf]
    %v2682 = vld [vmem:[%s5 + $0x18] sm:$0xf]
    %v2683 = vld [vmem:[%s5 + $0x1c] sm:$0xf]
    %v2684 = vld [vmem:[%s5 + $0x20] sm:$0xf]
    %v2685 = vld [vmem:[%s5 + $0x24] sm:$0xf]
    %v2686 = vld [vmem:[%s5 + $0x28] sm:$0xf]
    %v2687 = vld [vmem:[%s5 + $0x2c] sm:$0xf]
    %v2688 = vld [vmem:[%s5 + $0x30] sm:$0xf]
    %v2689 = vld [vmem:[%s5 + $0x34] sm:$0xf]
    %v2690 = vld [vmem:[%s5 + $0x38] sm:$0xf]
    %v2691 = vld [vmem:[%s5 + $0x3c] sm:$0xf]
    %v2692 = vld [vmem:[%s5 + $0x40] sm:$0xf]
    %v2693 = vld [vmem:[%s5 + $0x44] sm:$0xf]
    %v2694 = vld [vmem:[%s5 + $0x48] sm:$0xf]
    %v2695 = vld [vmem:[%s5 + $0x4c] sm:$0xf]
    %v2696 = vld [vmem:[%s5 + $0x50] sm:$0xf]
    %v2697 = vld [vmem:[%s5 + $0x54] sm:$0xf]
    %v2698 = vld [vmem:[%s5 + $0x58] sm:$0xf]
    %v2699 = vld [vmem:[%s5 + $0x5c] sm:$0xf]
    %v2700 = vld [vmem:[%s5 + $0x60] sm:$0xf]
    %v2701 = vld [vmem:[%s5 + $0x64] sm:$0xf]
    %v2702 = vld [vmem:[%s5 + $0x68] sm:$0xf]
    %v2703 = vld [vmem:[%s5 + $0x6c] sm:$0xf]
    %v2704 = vld [vmem:[%s5 + $0x70] sm:$0xf]
    %v2705 = vld [vmem:[%s5 + $0x74] sm:$0xf]
    %v2706 = vld [vmem:[%s5 + $0x78] sm:$0xf]
    %v2707 = vld [vmem:[%s5 + $0x7c] sm:$0xf]
    %v2708 = vld [vmem:[%s6] sm:$0x1]
    %v2710 = vlaneseq
    %v2711 = vshrl.u32 %v2710, 7
    %v2712 = vsub.s32 0, %v2711
    %v2713 = vrot.slane %v2708, %v2712
    %v2747 = vunpack.c.l.b16 %v2676
    %v2748 = vunpack.c.l.b16 %v2677
    %v2749 = vunpack.c.l.b16 %v2678
    %v2750 = vunpack.c.l.b16 %v2679
    %v2751 = vunpack.c.l.b16 %v2680
    %v2752 = vunpack.c.l.b16 %v2681
    %v2753 = vunpack.c.l.b16 %v2682
    %v2754 = vunpack.c.l.b16 %v2683
    %v2755 = vunpack.c.l.b16 %v2684
    %v2756 = vunpack.c.l.b16 %v2685
    %v2757 = vunpack.c.l.b16 %v2686
    %v2758 = vunpack.c.l.b16 %v2687
    %v2759 = vunpack.c.l.b16 %v2688
    %v2760 = vunpack.c.l.b16 %v2689
    %v2761 = vunpack.c.l.b16 %v2690
    %v2762 = vunpack.c.l.b16 %v2691
    %v2763 = vunpack.c.l.b16 %v2692
    %v2764 = vunpack.c.l.b16 %v2693
    %v2765 = vunpack.c.l.b16 %v2694
    %v2766 = vunpack.c.l.b16 %v2695
    %v2767 = vunpack.c.l.b16 %v2696
    %v2768 = vunpack.c.l.b16 %v2697
    %v2769 = vunpack.c.l.b16 %v2698
    %v2770 = vunpack.c.l.b16 %v2699
    %v2771 = vunpack.c.l.b16 %v2700
    %v2772 = vunpack.c.l.b16 %v2701
    %v2773 = vunpack.c.l.b16 %v2702
    %v2774 = vunpack.c.l.b16 %v2703
    %v2775 = vunpack.c.l.b16 %v2704
    %v2776 = vunpack.c.l.b16 %v2705
    %v2777 = vunpack.c.l.b16 %v2706
    %v2778 = vunpack.c.l.b16 %v2707
    %v2779 = vpack.c.b16 %v2748, %v2747
    %v2780 = vpack.c.b16 %v2750, %v2749
    %v2781 = vpack.c.b16 %v2752, %v2751
    %v2782 = vpack.c.b16 %v2754, %v2753
    %v2783 = vpack.c.b16 %v2756, %v2755
    %v2784 = vpack.c.b16 %v2758, %v2757
    %v2785 = vpack.c.b16 %v2760, %v2759
    %v2786 = vpack.c.b16 %v2762, %v2761
    %v2787 = vpack.c.b16 %v2764, %v2763
    %v2788 = vpack.c.b16 %v2766, %v2765
    %v2789 = vpack.c.b16 %v2768, %v2767
    %v2790 = vpack.c.b16 %v2770, %v2769
    %v2791 = vpack.c.b16 %v2772, %v2771
    %v2792 = vpack.c.b16 %v2774, %v2773
    %v2793 = vpack.c.b16 %v2776, %v2775
    %v2794 = vpack.c.b16 %v2778, %v2777
    %2811 = vmatprep.subr.bf16.mxu0 0
    %2812 = vmatpush1.bf16.msra.mxu0 %v2779
    %2813 = vmatprep.subr.bf16.mxu0 0
    %2814 = vmatpush1.bf16.msra.mxu0 %v2780
    %2815 = vmatprep.subr.bf16.mxu0 0
    %2816 = vmatpush1.bf16.msra.mxu0 %v2781
    %2817 = vmatprep.subr.bf16.mxu0 0
    %2818 = vmatpush1.bf16.msra.mxu0 %v2782
    %2819 = vmatprep.subr.bf16.mxu0 0
    %2820 = vmatpush1.bf16.msra.mxu0 %v2783
    %2821 = vmatprep.subr.bf16.mxu0 0
    %2822 = vmatpush1.bf16.msra.mxu0 %v2784
    %2823 = vmatprep.subr.bf16.mxu0 0
    %2824 = vmatpush1.bf16.msra.mxu0 %v2785
    %2825 = vmatprep.subr.bf16.mxu0 0
    %2826 = vmatpush1.bf16.msra.mxu0 %v2786
    %2827 = vmatprep.subr.bf16.mxu0 0
    %2828 = vmatpush1.bf16.msra.mxu0 %v2787
    %2829 = vmatprep.subr.bf16.mxu0 0
    %2830 = vmatpush1.bf16.msra.mxu0 %v2788
    %2831 = vmatprep.subr.bf16.mxu0 0
    %2832 = vmatpush1.bf16.msra.mxu0 %v2789
    %2833 = vmatprep.subr.bf16.mxu0 0
    %2834 = vmatpush1.bf16.msra.mxu0 %v2790
    %2835 = vmatprep.subr.bf16.mxu0 0
    %2836 = vmatpush1.bf16.msra.mxu0 %v2791
    %2837 = vmatprep.subr.bf16.mxu0 0
    %2838 = vmatpush1.bf16.msra.mxu0 %v2792
    %2839 = vmatprep.subr.bf16.mxu0 0
    %2840 = vmatpush1.bf16.msra.mxu0 %v2793
    %2841 = vmatprep.subr.bf16.mxu0 0
    %2842 = vmatpush1.bf16.msra.mxu0 %v2794
    %2843 = vmatprep.mubr.bf16.mxu0 %v2675
    %2844 = vmatmul.mubr.bf16.gmra.mrb[0].mxu0 %v2674
    %v2845 = vpop.f32.mrb[0].mxu0
    %v2846 = vadd.f32 %v2713, %v2845
    %v2847 = vpop.f32.mrb[0].mxu0
    %v2848 = vpop.f32.mrb[0].mxu0
    %v2849 = vadd.f32 %v2713, %v2848
    %v2850 = vpop.f32.mrb[0].mxu0
    %2851 = vdwg.mxu0
    %v2852 = vmax.f32 %v2846, 0.0
    %v2853 = vmax.f32 %v2849, 0.0
    %v2854 = vpack.c.bf16 %v2853, %v2852
    %v2855 = vld [vmem:[#allocation6] sm:$0xf]
    %v2856 = vld [vmem:[#allocation6 + $0x4] sm:$0xf]
    %v2857 = vld [vmem:[#allocation6 + $0x8] sm:$0xf]
    %v2858 = vld [vmem:[#allocation6 + $0xc] sm:$0xf]
    %v2859 = vld [vmem:[#allocation6 + $0x10] sm:$0xf]
    %v2860 = vld [vmem:[#allocation6 + $0x14] sm:$0xf]
    %v2861 = vld [vmem:[#allocation6 + $0x18] sm:$0xf]
    %v2862 = vld [vmem:[#allocation6 + $0x1c] sm:$0xf]
    %v2863 = vld [vmem:[#allocation6 + $0x20] sm:$0xf]
    %v2864 = vld [vmem:[#allocation6 + $0x24] sm:$0xf]
    %v2865 = vld [vmem:[#allocation6 + $0x28] sm:$0xf]
    %v2866 = vld [vmem:[#allocation6 + $0x2c] sm:$0xf]
    %v2867 = vld [vmem:[#allocation6 + $0x30] sm:$0xf]
    %v2868 = vld [vmem:[#allocation6 + $0x34] sm:$0xf]
    %v2869 = vld [vmem:[#allocation6 + $0x38] sm:$0xf]
    %v2870 = vld [vmem:[#allocation6 + $0x3c] sm:$0xf]
    %v2871 = vld [vmem:[%s8] sm:$0x1]
    %v2873 = vlaneseq
    %v2874 = vshrl.u32 %v2873, 7
    %v2875 = vsub.s32 0, %v2874
    %v2876 = vrot.slane %v2871, %v2875
    %v2894 = vunpack.c.l.b16 %v2855
    %v2895 = vunpack.c.l.b16 %v2856
    %v2896 = vunpack.c.l.b16 %v2857
    %v2897 = vunpack.c.l.b16 %v2858
    %v2898 = vunpack.c.l.b16 %v2859
    %v2899 = vunpack.c.l.b16 %v2860
    %v2900 = vunpack.c.l.b16 %v2861
    %v2901 = vunpack.c.l.b16 %v2862
    %v2902 = vunpack.c.l.b16 %v2863
    %v2903 = vunpack.c.l.b16 %v2864
    %v2904 = vunpack.c.l.b16 %v2865
    %v2905 = vunpack.c.l.b16 %v2866
    %v2906 = vunpack.c.l.b16 %v2867
    %v2907 = vunpack.c.l.b16 %v2868
    %v2908 = vunpack.c.l.b16 %v2869
    %v2909 = vunpack.c.l.b16 %v2870
    %v2910 = vpack.c.b16 %v2895, %v2894
    %v2911 = vpack.c.b16 %v2897, %v2896
    %v2912 = vpack.c.b16 %v2899, %v2898
    %v2913 = vpack.c.b16 %v2901, %v2900
    %v2914 = vpack.c.b16 %v2903, %v2902
    %v2915 = vpack.c.b16 %v2905, %v2904
    %v2916 = vpack.c.b16 %v2907, %v2906
    %v2917 = vpack.c.b16 %v2909, %v2908
    %2926 = vmatprep.subr.bf16.mxu0 0
    %2927 = vmatpush1.bf16.msra.mxu0 %v2910
    %2928 = vmatprep.subr.bf16.mxu0 0
    %2929 = vmatpush1.bf16.msra.mxu0 %v2911
    %2930 = vmatprep.subr.bf16.mxu0 0
    %2931 = vmatpush1.bf16.msra.mxu0 %v2912
    %2932 = vmatprep.subr.bf16.mxu0 0
    %2933 = vmatpush1.bf16.msra.mxu0 %v2913
    %2934 = vmatprep.subr.bf16.mxu0 0
    %2935 = vmatpush1.bf16.msra.mxu0 %v2914
    %2936 = vmatprep.subr.bf16.mxu0 0
    %2937 = vmatpush1.bf16.msra.mxu0 %v2915
    %2938 = vmatprep.subr.bf16.mxu0 0
    %2939 = vmatpush1.bf16.msra.mxu0 %v2916
    %2940 = vmatprep.subr.bf16.mxu0 0
    %2941 = vmatpush1.bf16.msra.mxu0 %v2917
    %2942 = vmatprep.subr.bf16.mxu0 0
    %2943 = vmatpush1.bf16.msra.mxu0 0
    %2944 = vmatprep.subr.bf16.mxu0 0
    %2945 = vmatpush1.bf16.msra.mxu0 0
    %2946 = vmatprep.subr.bf16.mxu0 0
    %2947 = vmatpush1.bf16.msra.mxu0 0
    %2948 = vmatprep.subr.bf16.mxu0 0
    %2949 = vmatpush1.bf16.msra.mxu0 0
    %2950 = vmatprep.subr.bf16.mxu0 0
    %2951 = vmatpush1.bf16.msra.mxu0 0
    %2952 = vmatprep.subr.bf16.mxu0 0
    %2953 = vmatpush1.bf16.msra.mxu0 0
    %2954 = vmatprep.subr.bf16.mxu0 0
    %2955 = vmatpush1.bf16.msra.mxu0 0
    %2956 = vmatprep.subr.bf16.mxu0 0
    %2957 = vmatpush1.bf16.msra.mxu0 0
    %2958 = vmatprep.mubr.bf16.mxu0 0
    %2959 = vmatmul.mubr.bf16.gmra.mrb[0].mxu0 %v2854
    %v2960 = vpop.f32.mrb[0].mxu0
    %v2961 = vadd.f32 %v2876, %v2960
    %v2962 = vpop.f32.mrb[0].mxu0
    %v2963 = vpop.f32.mrb[0].mxu0
    %v2964 = vadd.f32 %v2876, %v2963
    %v2965 = vpop.f32.mrb[0].mxu0
    %2966 = vdwg.mxu0
    %2967 = vst [vmem:[#allocation7] sm:$0xff] %v2961
    %2968 = vst [vmem:[#allocation7 + $0x8] sm:$0xff] %v2964
    // Predicated region
    $region50: #{map_to_coeff_forward.1} parent=1 // pred_check
      _
    $region51: #{map_to_coeff_forward.1} parent=1 // pred_check_branch
      %2970 = sbr.rel (0) target = $region53
    $region52: #{map_to_coeff_forward.1} parent=1 // pred_region
      // Predicated region
      $region54: #{map_to_coeff_forward.1} parent=52 // pred_check
        _
      $region55: #{map_to_coeff_forward.1} parent=52 // pred_check_branch
        %2972 = sbr.rel (0) target = $region57
      $region56: #{map_to_coeff_forward.1} parent=52 // pred_region
        // Predicated region
        $region58: #{map_to_coeff_forward.1} parent=56 // pred_check
          _
        $region59: #{map_to_coeff_forward.1} parent=56 // pred_check_branch
          %2974 = sbr.rel target = $region61
        $region60: #{map_to_coeff_forward.1} parent=56 // pred_region
          // Predicated region
          $region73: #{map_to_coeff_forward.1} parent=60 // pred_check
            _
          $region74: #{map_to_coeff_forward.1} parent=60 // pred_check_branch
            %2989 = sbr.rel (0) target = $region76
          $region75: #{map_to_coeff_forward.1} parent=60 // pred_region
            loop: start=0, step=1, limit=1
            $region77: #{map_to_coeff_forward.1} parent=75 // loop_pre_header
              _
            $region78: #{map_to_coeff_forward.1} parent=75 // loop_header
              %s2992 = sphi 0, %s2996
              %p2993 = scmp.ge.s32.totalorder %s2992, 1
              %s2997 = sphi [#allocation7], [#allocation7]
              %s2998 = sphi %s9, %s9
            $region79: #{map_to_coeff_forward.1} parent=75 // loop_header_branch
              %2995 = sbr.rel (%p2993) target = $region83
            $region80: #{map_to_coeff_forward.1} parent=75 // loop_body
              %v2999 = vld [vmem:[%s2997] sm:$0x3]
              %3000 = vst [vmem:[%s2998] sm:$0x3] %v2999
            $region81: #{map_to_coeff_forward.1} parent=75 // loop_footer
              %s2996 = sadd.s32 1, %s2992
            $region82: #{map_to_coeff_forward.1} parent=75 // loop_footer_branch
              %2991 = sbr.rel target = $region78
            $region83: #{map_to_coeff_forward.1} parent=75 // loop_exit
              _
          $region76: #{map_to_coeff_forward.1} parent=60 // pred_fallthru
            _
        $region61: #{map_to_coeff_forward.1} parent=56 // pred_fallthru
          _
        // Predicated region
        $region62: #{map_to_coeff_forward.1} parent=56 // pred_check
          _
        $region63: #{map_to_coeff_forward.1} parent=56 // pred_check_branch
          %2976 = sbr.rel (0) target = $region65
        $region64: #{map_to_coeff_forward.1} parent=56 // pred_region
          loop: start=0, step=1, limit=1
          $region66: #{map_to_coeff_forward.1} parent=64 // loop_pre_header
            _
          $region67: #{map_to_coeff_forward.1} parent=64 // loop_header
            %s2979 = sphi 0, %s2983
            %p2980 = scmp.ge.s32.totalorder %s2979, 1
            %s2984 = sphi [#allocation7], [#allocation7]
            %s2985 = sphi %s9, %s9
          $region68: #{map_to_coeff_forward.1} parent=64 // loop_header_branch
            %2982 = sbr.rel (%p2980) target = $region72
          $region69: #{map_to_coeff_forward.1} parent=64 // loop_body
            %v2986 = vld [vmem:[%s2984] sm:$0x3]
            %2987 = vst [vmem:[%s2985] sm:$0x3] %v2986
          $region70: #{map_to_coeff_forward.1} parent=64 // loop_footer
            %s2983 = sadd.s32 1, %s2979
          $region71: #{map_to_coeff_forward.1} parent=64 // loop_footer_branch
            %2978 = sbr.rel target = $region67
          $region72: #{map_to_coeff_forward.1} parent=64 // loop_exit
            _
        $region65: #{map_to_coeff_forward.1} parent=56 // pred_fallthru
          _
      $region57: #{map_to_coeff_forward.1} parent=52 // pred_fallthru
        _
      %3001 = vnop
    $region53: #{map_to_coeff_forward.1} parent=1 // pred_fallthru
      _
    // Predicated region
    $region84: #{map_to_coeff_forward.1} parent=1 // pred_check
      _
    $region85: #{map_to_coeff_forward.1} parent=1 // pred_check_branch
      %3003 = sbr.rel (0) target = $region87
    $region86: #{map_to_coeff_forward.1} parent=1 // pred_region
      _
    $region87: #{map_to_coeff_forward.1} parent=1 // pred_fallthru
      _
    %3004 = vsyncpa [#allocation3], 1
    %3005 = vsyncpa [#allocation5], 1

</llo_original>
